<compile_context>
chip_gen: v6e
topology: v6e:2x2x1
jax: 0.10.0
libtpu: 0.0.40
codegen_flags: <defaults>
</compile_context>

<pallas_src>
import math
import functools

import jax
import jax.numpy as jnp
import numpy as np
from jax import lax
from jax.experimental import pallas as pl
from jax.experimental.pallas import tpu as pltpu


def _pe_kernel(w_ref, b_ref, invdt_ref, phase_ref, y_ref, x_ref, out_ref, *, hidden_dim):
    """One tile of positions.

    w_ref     : (dim, 2*hd)  bf16  projection weight (Conv2d 1x1 weight, squeezed)
    b_ref     : (dim, 1)     f32   projection bias
    invdt_ref : (2*hd, 1)    f32   1 / dim_t per feature channel
    phase_ref : (2*hd, 1)    f32   0 (sin channels) or pi/2 (cos channels)
    y_ref     : (1, tile_n)  f32   normalized*scaled y coordinate per position
    x_ref     : (1, tile_n)  f32   normalized*scaled x coordinate per position
    out_ref   : (dim, tile_n) f32
    """
    two_hd = invdt_ref.shape[0]
    # Channel index along the sublane axis: first hd channels use y, last hd use x.
    c = lax.broadcasted_iota(jnp.int32, (two_hd, 1), 0)
    coord = jnp.where(c < hidden_dim, y_ref[...], x_ref[...])        # (2*hd, tile_n)

    # pos = coord / dim_t ; cos folded into sin via phase offset (one EUP op).
    pos = coord * invdt_ref[...] + phase_ref[...]                    # (2*hd, tile_n)
    feat = jnp.sin(pos).astype(jnp.bfloat16)

    out = jnp.dot(w_ref[...], feat, preferred_element_type=jnp.float32) + b_ref[...]
    out_ref[...] = out.astype(out_ref.dtype)


def _choose_tile(n_pad):
    for cand in (1024, 512, 256, 128):
        if n_pad % cand == 0:
            return cand
    return n_pad  # n_pad is always a multiple of 128, so unreachable


def positional_encoding_fourier(B, H, W, weight, bias, *,
                                hidden_dim=32, temperature=10000, tile_n=None):
    """JAX/Pallas equivalent of PositionalEncodingFourier.forward(B, H, W).

    weight: (dim, 2*hidden_dim, 1, 1)  -- Conv2d(2*hidden_dim, dim, k=1) weight
    bias  : (dim,)
    returns (B, dim, H, W) float32  (NCHW, matching PyTorch)
    """
    dim = weight.shape[0]
    two_hd = 2 * hidden_dim
    scale = 2.0 * math.pi
    eps = 1e-6

    # ---- host-side precomputed constants -----------------------------------
    w2 = weight.reshape(dim, two_hd).astype(jnp.bfloat16)            # (dim, 2*hd)
    b2 = bias.reshape(dim, 1).astype(jnp.float32)                    # (dim, 1)

    ch = np.arange(two_hd) % hidden_dim
    dim_t = np.asarray(temperature, np.float64) ** (2.0 * (ch // 2) / hidden_dim)
    inv_dt = (1.0 / dim_t).astype(np.float32).reshape(two_hd, 1)
    phase = np.where(ch % 2 == 0, 0.0, np.pi / 2.0).astype(np.float32).reshape(two_hd, 1)
    inv_dt = jnp.asarray(inv_dt)
    phase = jnp.asarray(phase)

    # Flattened, normalized, pre-scaled coordinates (matches the cumsum-of-ones ref:
    # cumsum along H/W of ones == 1..H / 1..W, divided by last entry + eps, * 2*pi).
    N = H * W
    yy, xx = np.meshgrid(np.arange(1, H + 1, dtype=np.float32),
                         np.arange(1, W + 1, dtype=np.float32), indexing="ij")
    y_flat = (yy.reshape(-1) / (H + eps) * scale).astype(np.float32)
    x_flat = (xx.reshape(-1) / (W + eps) * scale).astype(np.float32)

    # Pad N to a lane-friendly multiple of 128.
    N_pad = ((N + 127) // 128) * 128
    if N_pad != N:
        y_flat = np.pad(y_flat, (0, N_pad - N))
        x_flat = np.pad(x_flat, (0, N_pad - N))
    y_in = jnp.asarray(y_flat).reshape(1, N_pad)
    x_in = jnp.asarray(x_flat).reshape(1, N_pad)

    if tile_n is None:
        tile_n = _choose_tile(N_pad)
    assert N_pad % tile_n == 0 and tile_n % 128 == 0

    kernel = functools.partial(_pe_kernel, hidden_dim=hidden_dim)

    out = pl.pallas_call(
        kernel,
        out_shape=jax.ShapeDtypeStruct((dim, N_pad), jnp.float32),
        grid_spec=pltpu.PrefetchScalarGridSpec(
            num_scalar_prefetch=0,
            grid=(N_pad // tile_n,),
            in_specs=[
                pl.BlockSpec((dim, two_hd), lambda n: (0, 0)),    # weight (resident)
                pl.BlockSpec((dim, 1), lambda n: (0, 0)),         # bias
                pl.BlockSpec((two_hd, 1), lambda n: (0, 0)),      # 1/dim_t
                pl.BlockSpec((two_hd, 1), lambda n: (0, 0)),      # phase
                pl.BlockSpec((1, tile_n), lambda n: (0, n)),      # y coords
                pl.BlockSpec((1, tile_n), lambda n: (0, n)),      # x coords
            ],
            out_specs=pl.BlockSpec((dim, tile_n), lambda n: (0, n)),
        ),
        compiler_params=pltpu.CompilerParams(
            dimension_semantics=("parallel",),
            vmem_limit_bytes=64 << 20),
    )(w2, b2, inv_dt, phase, y_in, x_in)

    # (dim, N_pad) -> (dim, H, W) -> broadcast over batch (PE is batch-independent).
    out = out[:, :N].reshape(dim, H, W)
    return jnp.broadcast_to(out[None], (B, dim, H, W))


def _reference(B, H, W, weight, bias, hidden_dim, temperature):
    """Pure-JAX re-implementation of the PyTorch forward, for verification."""
    scale = 2.0 * math.pi
    eps = 1e-6
    y_embed = jnp.broadcast_to(
        jnp.arange(1, H + 1, dtype=jnp.float32)[None, :, None], (B, H, W))
    x_embed = jnp.broadcast_to(
        jnp.arange(1, W + 1, dtype=jnp.float32)[None, None, :], (B, H, W))
    y_embed = y_embed / (float(H) + eps) * scale
    x_embed = x_embed / (float(W) + eps) * scale
    dim_t = jnp.arange(hidden_dim, dtype=jnp.float32)
    dim_t = jnp.float32(temperature) ** (2.0 * jnp.floor(dim_t / 2.0) / hidden_dim)
    pos_x = x_embed[..., None] / dim_t
    pos_y = y_embed[..., None] / dim_t
    pos_x = jnp.stack((jnp.sin(pos_x[..., 0::2]), jnp.cos(pos_x[..., 1::2])),
                      axis=4).reshape(B, H, W, -1)
    pos_y = jnp.stack((jnp.sin(pos_y[..., 0::2]), jnp.cos(pos_y[..., 1::2])),
                      axis=4).reshape(B, H, W, -1)
    pos = jnp.concatenate((pos_y, pos_x), axis=3)              # (B, H, W, 2*hd)
    dim = weight.shape[0]
    w2 = weight.reshape(dim, 2 * hidden_dim)
    return jnp.einsum('bhwc,dc->bdhw', pos, w2) + bias[None, :, None, None]


if __name__ == "__main__":
    hidden_dim = 32
    dim = 128
    temperature = 10000

    key = jax.random.PRNGKey(0)
    kw, kb = jax.random.split(key)
    weight = jax.random.normal(kw, (dim, 2 * hidden_dim, 1, 1), dtype=jnp.float32) * 0.02
    bias = jax.random.normal(kb, (dim,), dtype=jnp.float32) * 0.02

    # Case 1: N is already a multiple of 128.
    B, H, W = 2, 16, 16
    out = positional_encoding_fourier(B, H, W, weight, bias,
                                      hidden_dim=hidden_dim, temperature=temperature)
    out = jax.block_until_ready(out)
    assert out.shape == (B, dim, H, W), out.shape
    ref = jax.block_until_ready(
        _reference(B, H, W, weight, bias, hidden_dim, temperature))
    # bf16 MXU inputs (f32 accumulation) -> slightly looser tolerance than pure f32.
    np.testing.assert_allclose(np.asarray(out), np.asarray(ref), atol=2e-2, rtol=2e-2)

    # Case 2: ragged N (exercises the lane-padding path).
    B2, H2, W2 = 2, 10, 13
    out2 = jax.block_until_ready(
        positional_encoding_fourier(B2, H2, W2, weight, bias,
                                    hidden_dim=hidden_dim, temperature=temperature))
    assert out2.shape == (B2, dim, H2, W2), out2.shape
    ref2 = jax.block_until_ready(
        _reference(B2, H2, W2, weight, bias, hidden_dim, temperature))
    np.testing.assert_allclose(np.asarray(out2), np.asarray(ref2), atol=2e-2, rtol=2e-2)

    print("KERNEL_OK")
</pallas_src>

<mosaic_0001>
module attributes {stable_mosaic.version = 11 : i64} {
  func.func @_pe_kernel(%arg0: i32, %arg1: memref<128x64xbf16, #tpu.memory_space<vmem>>, %arg2: memref<128x1xf32, #tpu.memory_space<vmem>>, %arg3: memref<64x1xf32, #tpu.memory_space<vmem>>, %arg4: memref<64x1xf32, #tpu.memory_space<vmem>>, %arg5: memref<1x256xf32, #tpu.memory_space<vmem>>, %arg6: memref<1x256xf32, #tpu.memory_space<vmem>>, %arg7: memref<128x256xf32, #tpu.memory_space<vmem>>) attributes {dimension_semantics = [#tpu.dimension_semantics<parallel>], iteration_bounds = array<i64: 1>, scalar_prefetch = 0 : i64, scratch_operands = 0 : i64, tpu.core_type = #tpu.core_type<tc>, window_params = [{pipeline_mode = #tpu.pipeline_mode<synchronous>, transform_indices = @transform_0, window_bounds = array<i64: 128, 64>}, {pipeline_mode = #tpu.pipeline_mode<synchronous>, transform_indices = @transform_1, window_bounds = array<i64: 128, 1>}, {pipeline_mode = #tpu.pipeline_mode<synchronous>, transform_indices = @transform_2, window_bounds = array<i64: 64, 1>}, {pipeline_mode = #tpu.pipeline_mode<synchronous>, transform_indices = @transform_3, window_bounds = array<i64: 64, 1>}, {transform_indices = @transform_4, window_bounds = array<i64: 1, 256>}, {transform_indices = @transform_5, window_bounds = array<i64: 1, 256>}, {transform_indices = @transform_6, window_bounds = array<i64: 128, 256>}]} {
    %0 = tpu.iota {dimensions = array<i32: 0>} : vector<64x1xi32>
    %c32_i32 = arith.constant 32 : i32
    %1 = vector.broadcast %c32_i32 : i32 to vector<64x1xi32>
    %2 = arith.cmpi slt, %0, %1 : vector<64x1xi32>
    %c0 = arith.constant 0 : index
    %c0_0 = arith.constant 0 : index
    %3 = vector.load %arg5[%c0, %c0_0] : memref<1x256xf32, #tpu.memory_space<vmem>>, vector<1x256xf32>
    %c0_1 = arith.constant 0 : index
    %c0_2 = arith.constant 0 : index
    %4 = vector.load %arg6[%c0_1, %c0_2] : memref<1x256xf32, #tpu.memory_space<vmem>>, vector<1x256xf32>
    %5 = vector.shape_cast %2 : vector<64x1xi1> to vector<64x1xi1>
    %6 = vector.broadcast %5 : vector<64x1xi1> to vector<64x256xi1>
    %7 = vector.shape_cast %3 : vector<1x256xf32> to vector<1x256xf32>
    %8 = vector.broadcast %7 : vector<1x256xf32> to vector<64x256xf32>
    %9 = vector.shape_cast %4 : vector<1x256xf32> to vector<1x256xf32>
    %10 = vector.broadcast %9 : vector<1x256xf32> to vector<64x256xf32>
    %11 = arith.select %6, %8, %10 : vector<64x256xi1>, vector<64x256xf32>
    %c0_3 = arith.constant 0 : index
    %c0_4 = arith.constant 0 : index
    %12 = vector.load %arg3[%c0_3, %c0_4] : memref<64x1xf32, #tpu.memory_space<vmem>>, vector<64x1xf32>
    %13 = vector.broadcast %12 : vector<64x1xf32> to vector<64x256xf32>
    %14 = arith.mulf %11, %13 : vector<64x256xf32>
    %c0_5 = arith.constant 0 : index
    %c0_6 = arith.constant 0 : index
    %15 = vector.load %arg4[%c0_5, %c0_6] : memref<64x1xf32, #tpu.memory_space<vmem>>, vector<64x1xf32>
    %16 = vector.broadcast %15 : vector<64x1xf32> to vector<64x256xf32>
    %17 = arith.addf %14, %16 : vector<64x256xf32>
    %18 = math.sin %17 : vector<64x256xf32>
    %19 = arith.truncf %18 : vector<64x256xf32> to vector<64x256xbf16>
    %c0_7 = arith.constant 0 : index
    %c0_8 = arith.constant 0 : index
    %20 = vector.load %arg1[%c0_7, %c0_8] : memref<128x64xbf16, #tpu.memory_space<vmem>>, vector<128x64xbf16>
    %cst = arith.constant dense<0.000000e+00> : vector<128x256xf32>
    %21 = tpu.matmul %20, %19, %cst {dimension_numbers = #tpu.dot_dimension_numbers<[1], [0], [0], [1], [0, 0, 1, 1], [], []>} : vector<128x64xbf16>, vector<64x256xbf16>, vector<128x256xf32> -> vector<128x256xf32>
    %c0_9 = arith.constant 0 : index
    %c0_10 = arith.constant 0 : index
    %22 = vector.load %arg2[%c0_9, %c0_10] : memref<128x1xf32, #tpu.memory_space<vmem>>, vector<128x1xf32>
    %23 = vector.broadcast %22 : vector<128x1xf32> to vector<128x256xf32>
    %24 = arith.addf %21, %23 : vector<128x256xf32>
    %c0_11 = arith.constant 0 : index
    %c0_12 = arith.constant 0 : index
    %25 = vector.load %arg7[%c0_11, %c0_12] : memref<128x256xf32, #tpu.memory_space<vmem>>, vector<128x256xf32>
    tpu.vector_store %arg7[%c0_11, %c0_12], %24 {strides = array<i32>} : memref<128x256xf32, #tpu.memory_space<vmem>>, vector<128x256xf32>,
    return
  }
  func.func @transform_0(%arg0: i32) -> (i32, i32) {
    %c0_i32 = arith.constant 0 : i32
    %c0_i32_0 = arith.constant 0 : i32
    %c0_i32_1 = arith.constant 0 : i32
    return %c0_i32, %c0_i32_0 : i32, i32
  }
  func.func @transform_1(%arg0: i32) -> (i32, i32) {
    %c0_i32 = arith.constant 0 : i32
    %c0_i32_0 = arith.constant 0 : i32
    %c0_i32_1 = arith.constant 0 : i32
    return %c0_i32, %c0_i32_0 : i32, i32
  }
  func.func @transform_2(%arg0: i32) -> (i32, i32) {
    %c0_i32 = arith.constant 0 : i32
    %c0_i32_0 = arith.constant 0 : i32
    %c0_i32_1 = arith.constant 0 : i32
    return %c0_i32, %c0_i32_0 : i32, i32
  }
  func.func @transform_3(%arg0: i32) -> (i32, i32) {
    %c0_i32 = arith.constant 0 : i32
    %c0_i32_0 = arith.constant 0 : i32
    %c0_i32_1 = arith.constant 0 : i32
    return %c0_i32, %c0_i32_0 : i32, i32
  }
  func.func @transform_4(%arg0: i32) -> (i32, i32) {
    %c0_i32 = arith.constant 0 : i32
    %c0_i32_0 = arith.constant 0 : i32
    return %c0_i32, %arg0 : i32, i32
  }
  func.func @transform_5(%arg0: i32) -> (i32, i32) {
    %c0_i32 = arith.constant 0 : i32
    %c0_i32_0 = arith.constant 0 : i32
    return %c0_i32, %arg0 : i32, i32
  }
  func.func @transform_6(%arg0: i32) -> (i32, i32) {
    %c0_i32 = arith.constant 0 : i32
    %c0_i32_0 = arith.constant 0 : i32
    return %c0_i32, %arg0 : i32, i32
  }
}

</mosaic_0001>

<llo_original>
// kernel: tpu_custom_call.1
$region0: #{tpu_custom_call.1}
  #allocation0 [shape = 'u32[]', space=smem, size = 0x4, offset = 0x4, fixed_abs, tag = 'smem constant byte address 0x4 - core index']
  #allocation1 [shape = 'u32[144,128]{1,0:T(1,128)}', space=vmem, size = 0x12000, scoped, tag = 'internal scratch']
  %s0 = inlined_call_operand.vmem [shape: bf16[128,64], index: 0, kind: input, shape index: {}]
  %s1 = inlined_call_operand.vmem [shape: f32[128,1], index: 1, kind: input, shape index: {}]
  %s2 = inlined_call_operand.vmem [shape: f32[64,1], index: 2, kind: input, shape index: {}]
  %s3 = inlined_call_operand.vmem [shape: f32[64,1], index: 3, kind: input, shape index: {}]
  %s4 = inlined_call_operand.vmem [shape: f32[1,256], index: 4, kind: input, shape index: {}]
  %s5 = inlined_call_operand.vmem [shape: f32[1,256], index: 5, kind: input, shape index: {}]
  %s6 = inlined_call_operand.hbm [shape: f32[128,256], index: 6, kind: output, shape index: {}]
  %s7 = sld [smem:[#allocation0]]
  $region34: #{tpu_custom_call.1} parent=0
    _
  %s9 = ssub.s32 1, %s7
  %s10 = scalar_select 0, %s9, %s7
  $region1: #{tpu_custom_call.1} parent=0
    #allocation2 [shape = 'u8[131072]{0}', space=vmem, size = 0x20000, scoped, tag = 'output window, operand 0, single buffered']
    #allocation3 [shape = 's32[1]{0}', space=sflag, size = 0x4, scoped, tag = 'scoped memory for tpu_custom_call.1']
    %11 = vsyncpa [#allocation3], 0
    // Predicated region
    $region2: #{tpu_custom_call.1} parent=1 // pred_check
      _
    $region3: #{tpu_custom_call.1} parent=1 // pred_check_branch
      %13 = sbr.rel (0) target = $region5
    $region4: #{tpu_custom_call.1} parent=1 // pred_region
      _
    $region5: #{tpu_custom_call.1} parent=1 // pred_fallthru
      _
    // Predicated region
    $region6: #{tpu_custom_call.1} parent=1 // pred_check
      _
    $region7: #{tpu_custom_call.1} parent=1 // pred_check_branch
      %15 = sbr.rel (0) target = $region9
    $region8: #{tpu_custom_call.1} parent=1 // pred_region
      _
    $region9: #{tpu_custom_call.1} parent=1 // pred_fallthru
      _
    // Predicated region
    $region10: #{tpu_custom_call.1} parent=1 // pred_check
      _
    $region11: #{tpu_custom_call.1} parent=1 // pred_check_branch
      %17 = sbr.rel (0) target = $region13
    $region12: #{tpu_custom_call.1} parent=1 // pred_region
      _
    $region13: #{tpu_custom_call.1} parent=1 // pred_fallthru
      _
    // Predicated region
    $region14: #{tpu_custom_call.1} parent=1 // pred_check
      _
    $region15: #{tpu_custom_call.1} parent=1 // pred_check_branch
      %19 = sbr.rel (0) target = $region17
    $region16: #{tpu_custom_call.1} parent=1 // pred_region
      _
    $region17: #{tpu_custom_call.1} parent=1 // pred_fallthru
      _
    // Predicated region
    $region18: #{tpu_custom_call.1} parent=1 // pred_check
      _
    $region19: #{tpu_custom_call.1} parent=1 // pred_check_branch
      %21 = sbr.rel (0) target = $region21
    $region20: #{tpu_custom_call.1} parent=1 // pred_region
      _
    $region21: #{tpu_custom_call.1} parent=1 // pred_fallthru
      _
    // Predicated region
    $region22: #{tpu_custom_call.1} parent=1 // pred_check
      _
    $region23: #{tpu_custom_call.1} parent=1 // pred_check_branch
      %23 = sbr.rel (0) target = $region25
    $region24: #{tpu_custom_call.1} parent=1 // pred_region
      _
    $region25: #{tpu_custom_call.1} parent=1 // pred_fallthru
      _
    %v25 = vlaneseq
    %v26 = vshrl.u32 %v25, 7
    %v27 = vadd.s32 %v26, 8
    %v28 = vadd.s32 %v26, 16
    %v29 = vadd.s32 %v26, 24
    %v30 = vadd.s32 %v26, 32
    %v31 = vadd.s32 %v26, 40
    %v32 = vadd.s32 %v26, 48
    %v33 = vadd.s32 %v26, 56
    %vm34 = vcmp.lt.s32.totalorder %v26, 32
    %vm35 = vcmp.lt.s32.totalorder %v27, 32
    %vm36 = vcmp.lt.s32.totalorder %v28, 32
    %vm37 = vcmp.lt.s32.totalorder %v29, 32
    %vm38 = vcmp.lt.s32.totalorder %v30, 32
    %vm39 = vcmp.lt.s32.totalorder %v31, 32
    %vm40 = vcmp.lt.s32.totalorder %v32, 32
    %vm41 = vcmp.lt.s32.totalorder %v33, 32
    %v42 = vld [vmem:[%s4] sm:$0x3]
    %v43 = vld [vmem:[%s5] sm:$0x3]
    %v44 = vsel %vm34, 1, 0
    %v45 = vsel %vm35, 1, 0
    %v46 = vsel %vm36, 1, 0
    %v47 = vsel %vm37, 1, 0
    %v48 = vsel %vm38, 1, 0
    %v49 = vsel %vm39, 1, 0
    %v50 = vsel %vm40, 1, 0
    %v51 = vsel %vm41, 1, 0
    %vm52 = vcmp.eq.s32.totalorder %v44, 1
    %vm53 = vcmp.eq.s32.totalorder %v45, 1
    %vm54 = vcmp.eq.s32.totalorder %v46, 1
    %vm55 = vcmp.eq.s32.totalorder %v47, 1
    %vm56 = vcmp.eq.s32.totalorder %v48, 1
    %vm57 = vcmp.eq.s32.totalorder %v49, 1
    %vm58 = vcmp.eq.s32.totalorder %v50, 1
    %vm59 = vcmp.eq.s32.totalorder %v51, 1
    %v61 = vlaneseq
    %v62 = vshrl.u32 %v61, 7
    %v63 = vsub.s32 0, %v62
    %v64 = vrot.slane %v42, %v63
    %v65 = vlaneseq
    %v66 = vshrl.u32 %v65, 7
    %v67 = vsub.s32 1, %v66
    %v68 = vrot.slane %v42, %v67
    %v72 = vlaneseq
    %v73 = vshrl.u32 %v72, 7
    %v74 = vsub.s32 0, %v73
    %v75 = vrot.slane %v43, %v74
    %v76 = vlaneseq
    %v77 = vshrl.u32 %v76, 7
    %v78 = vsub.s32 1, %v77
    %v79 = vrot.slane %v43, %v78
    %v82 = vsel %vm52, %v64, %v75
    %v83 = vsel %vm52, %v68, %v79
    %v84 = vsel %vm53, %v64, %v75
    %v85 = vsel %vm53, %v68, %v79
    %v86 = vsel %vm54, %v64, %v75
    %v87 = vsel %vm54, %v68, %v79
    %v88 = vsel %vm55, %v64, %v75
    %v89 = vsel %vm55, %v68, %v79
    %v90 = vsel %vm56, %v64, %v75
    %v91 = vsel %vm56, %v68, %v79
    %v92 = vsel %vm57, %v64, %v75
    %v93 = vsel %vm57, %v68, %v79
    %v94 = vsel %vm58, %v64, %v75
    %v95 = vsel %vm58, %v68, %v79
    %v96 = vsel %vm59, %v64, %v75
    %v97 = vsel %vm59, %v68, %v79
    %v98 = vld [vmem:[%s2] sm:$0xff]
    %v99 = vld [vmem:[%s2 + $0x8] sm:$0xff]
    %v100 = vld [vmem:[%s2 + $0x10] sm:$0xff]
    %v101 = vld [vmem:[%s2 + $0x18] sm:$0xff]
    %v102 = vld [vmem:[%s2 + $0x20] sm:$0xff]
    %v103 = vld [vmem:[%s2 + $0x28] sm:$0xff]
    %v104 = vld [vmem:[%s2 + $0x30] sm:$0xff]
    %v105 = vld [vmem:[%s2 + $0x38] sm:$0xff]
    %107 = vset.pattern.permute.xlu0 0
    %108 = vperm.xlu0 %107, %v98
    %v109 = vpop.permute.xlu0 %108
    %112 = vset.pattern.permute.xlu0 0
    %113 = vperm.xlu0 %112, %v99
    %v114 = vpop.permute.xlu0 %113
    %117 = vset.pattern.permute.xlu0 0
    %118 = vperm.xlu0 %117, %v100
    %v119 = vpop.permute.xlu0 %118
    %122 = vset.pattern.permute.xlu0 0
    %123 = vperm.xlu0 %122, %v101
    %v124 = vpop.permute.xlu0 %123
    %127 = vset.pattern.permute.xlu0 0
    %128 = vperm.xlu0 %127, %v102
    %v129 = vpop.permute.xlu0 %128
    %132 = vset.pattern.permute.xlu0 0
    %133 = vperm.xlu0 %132, %v103
    %v134 = vpop.permute.xlu0 %133
    %137 = vset.pattern.permute.xlu0 0
    %138 = vperm.xlu0 %137, %v104
    %v139 = vpop.permute.xlu0 %138
    %142 = vset.pattern.permute.xlu0 0
    %143 = vperm.xlu0 %142, %v105
    %v144 = vpop.permute.xlu0 %143
    %v146 = vmul.f32 %v82, %v109
    %v147 = vmul.f32 %v83, %v109
    %v148 = vmul.f32 %v84, %v114
    %v149 = vmul.f32 %v85, %v114
    %v150 = vmul.f32 %v86, %v119
    %v151 = vmul.f32 %v87, %v119
    %v152 = vmul.f32 %v88, %v124
    %v153 = vmul.f32 %v89, %v124
    %v154 = vmul.f32 %v90, %v129
    %v155 = vmul.f32 %v91, %v129
    %v156 = vmul.f32 %v92, %v134
    %v157 = vmul.f32 %v93, %v134
    %v158 = vmul.f32 %v94, %v139
    %v159 = vmul.f32 %v95, %v139
    %v160 = vmul.f32 %v96, %v144
    %v161 = vmul.f32 %v97, %v144
    %v162 = vld [vmem:[%s3] sm:$0xff]
    %v163 = vld [vmem:[%s3 + $0x8] sm:$0xff]
    %v164 = vld [vmem:[%s3 + $0x10] sm:$0xff]
    %v165 = vld [vmem:[%s3 + $0x18] sm:$0xff]
    %v166 = vld [vmem:[%s3 + $0x20] sm:$0xff]
    %v167 = vld [vmem:[%s3 + $0x28] sm:$0xff]
    %v168 = vld [vmem:[%s3 + $0x30] sm:$0xff]
    %v169 = vld [vmem:[%s3 + $0x38] sm:$0xff]
    %171 = vset.pattern.permute.xlu0 0
    %172 = vperm.xlu0 %171, %v162
    %v173 = vpop.permute.xlu0 %172
    %176 = vset.pattern.permute.xlu0 0
    %177 = vperm.xlu0 %176, %v163
    %v178 = vpop.permute.xlu0 %177
    %181 = vset.pattern.permute.xlu0 0
    %182 = vperm.xlu0 %181, %v164
    %v183 = vpop.permute.xlu0 %182
    %186 = vset.pattern.permute.xlu0 0
    %187 = vperm.xlu0 %186, %v165
    %v188 = vpop.permute.xlu0 %187
    %191 = vset.pattern.permute.xlu0 0
    %192 = vperm.xlu0 %191, %v166
    %v193 = vpop.permute.xlu0 %192
    %196 = vset.pattern.permute.xlu0 0
    %197 = vperm.xlu0 %196, %v167
    %v198 = vpop.permute.xlu0 %197
    %201 = vset.pattern.permute.xlu0 0
    %202 = vperm.xlu0 %201, %v168
    %v203 = vpop.permute.xlu0 %202
    %206 = vset.pattern.permute.xlu0 0
    %207 = vperm.xlu0 %206, %v169
    %v208 = vpop.permute.xlu0 %207
    %v210 = vadd.f32 %v146, %v173
    %v211 = vadd.f32 %v147, %v173
    %v212 = vadd.f32 %v148, %v178
    %v213 = vadd.f32 %v149, %v178
    %v214 = vadd.f32 %v150, %v183
    %v215 = vadd.f32 %v151, %v183
    %v216 = vadd.f32 %v152, %v188
    %v217 = vadd.f32 %v153, %v188
    %v218 = vadd.f32 %v154, %v193
    %v219 = vadd.f32 %v155, %v193
    %v220 = vadd.f32 %v156, %v198
    %v221 = vadd.f32 %v157, %v198
    %v222 = vadd.f32 %v158, %v203
    %v223 = vadd.f32 %v159, %v203
    %v224 = vadd.f32 %v160, %v208
    %v225 = vadd.f32 %v161, %v208
    %v226 = vand.u32 2147483647, %v210
    %vm227 = vcmp.le.f32.partialorder %v226, 0.7853982
    %vm228 = vcmp.lt.s32.totalorder %v210, 0
    %v229 = vand.u32 %v210, 2139095040
    %v230 = vshrl.u32 %v229, 23
    %v231 = vsub.s32 %v230, 127
    %v232 = vand.u32 2147483647, %v210
    %v233 = vand.u32 %v232, 8388607
    %v234 = vor.u32 %v233, 8388608
    %v235 = vsub.s32 0, %v234
    %v236 = vadd.s32 %v231, 1
    %vm237 = vcmp.gt.s32.totalorder %v236, 0
    %v238 = vsel %vm237, %v236, 0
    %v239 = vshrl.u32 %v238, 5
    %v240 = vand.u32 %v238, 31
    %v241 = vsub.s32 32, %v240
    %v242 = vshrl.u32 683565275, %v241
    %v243 = vshll.u32 683565275, %v240
    %v244 = vshrl.u32 2475754826, %v241
    %v245 = vor.u32 %v243, %v244
    %v246 = vshll.u32 2475754826, %v240
    %v247 = vshrl.u32 2131351028, %v241
    %v248 = vor.u32 %v246, %v247
    %v249 = vshll.u32 2131351028, %v240
    %v250 = vshrl.u32 2102212464, %v241
    %v251 = vor.u32 %v249, %v250
    %v252 = vshll.u32 2102212464, %v240
    %v253 = vshrl.u32 920167782, %v241
    %v254 = vor.u32 %v252, %v253
    %v255 = vshll.u32 920167782, %v240
    %v256 = vshrl.u32 1326507024, %v241
    %v257 = vor.u32 %v255, %v256
    %vm258 = vcmp.lt.s32.totalorder %v239, 1
    %vm259 = vcmp.lt.s32.totalorder %v239, 2
    %vm260 = vcmp.lt.s32.totalorder %v239, 3
    %vm261 = vcmp.lt.s32.totalorder %v239, 4
    %v262 = vsel %vm258, %v242, %v245
    %v263 = vsel %vm261, %v251, 2102212464
    %v264 = vsel %vm260, %v248, %v263
    %v265 = vsel %vm259, %v262, %v264
    %v266 = vsel %vm258, %v245, %v248
    %v267 = vsel %vm261, %v254, 920167782
    %v268 = vsel %vm260, %v251, %v267
    %v269 = vsel %vm259, %v266, %v268
    %v270 = vsel %vm258, %v248, %v251
    %v271 = vsel %vm261, %v257, 1326507024
    %v272 = vsel %vm260, %v254, %v271
    %v273 = vsel %vm259, %v270, %v272
    %v274 = vshll.u32 %v234, 8
    %v275 = vmul.u32.u64.compose %v274, %v273
    %v276 = vextract.low.u32 %v275
    %v277 = vextract.high.u32 %v275
    %v278 = vmul.u32.u64.compose %v274, %v269
    %v279 = vextract.low.u32 %v278
    %v280 = vextract.high.u32 %v278
    %v281 = vmul.u32 %v274, %v265
    %v282 = vadd.s32 %v277, %v279
    %vm283 = vc.u32 %v277, %v279
    %v284 = vadd.s32 %v280, 1
    %v285 = vsel %vm283, %v284, %v280
    %v286 = vadd.s32 %v281, %v285
    %v287 = vadd.s32 %v286, 536870912
    %v288 = vshrl.u32 %v287, 30
    %v289 = vshll.u32 %v288, 30
    %v290 = vsub.s32 %v286, %v289
    %vm291 = vcmp.lt.s32.totalorder %v290, 0
    %v292 = vsub.s32 0, %v290
    %v293 = vsel %vm291, %v292, %v290
    %v294 = vclz %v293
    %v295 = vsub.s32 %v294, 2
    %vm296 = vcmp.gt.s32.totalorder 0, %v295
    %v297 = vsel %vm296, 0, %v295
    %v298 = vsub.s32 32, %v297
    %v299 = vshll.u32 %v290, %v297
    %v300 = vshrl.u32 %v282, %v298
    %v301 = vor.u32 %v299, %v300
    %v302 = vsub.s32 4294967266, %v297
    %v303 = vadd.s32 %v302, 127
    %v304 = vshll.u32 %v303, 23
    %v305 = vor.u32 4788187, %v304
    %v306 = vand.u32 2147483647, %v305
    %v308 = vcvt.s32.f32 %v301
    %v309 = vmul.f32 %v308, %v306
    %v310 = vxor.u32 %v309, 2147483648
    %v311 = vsel %vm228, %v310, %v309
    %v312 = vsub.s32 4, %v288
    %v313 = vsel %vm228, %v312, %v288
    %v314 = vsel %vm227, %v210, %v311
    %v315 = vsel %vm227, 0, %v313
    %v316 = vcosq.f32.pop %v314
    %v317 = vsinq.f32.pop %v314
    %vm318 = vweird.f32 %v210
    %v319 = vadd.s32 %v315, 3
    %v320 = vand.u32 %v319, 3
    %vm321 = vcmp.lt.s32.totalorder %v320, 2
    %vm322 = vcmp.eq.s32.totalorder %v320, 0
    %v323 = vxor.u32 %v317, 2147483648
    %v324 = vsel %vm322, %v316, %v323
    %vm325 = vcmp.eq.s32.totalorder %v320, 2
    %v326 = vxor.u32 %v316, 2147483648
    %v327 = vsel %vm325, %v326, %v317
    %v328 = vsel %vm321, %v324, %v327
    %v329 = vsel %vm318, nan, %v328
    %v330 = vand.u32 2147483647, %v211
    %vm331 = vcmp.le.f32.partialorder %v330, 0.7853982
    %vm332 = vcmp.lt.s32.totalorder %v211, 0
    %v333 = vand.u32 %v211, 2139095040
    %v334 = vshrl.u32 %v333, 23
    %v335 = vsub.s32 %v334, 127
    %v336 = vand.u32 2147483647, %v211
    %v337 = vand.u32 %v336, 8388607
    %v338 = vor.u32 %v337, 8388608
    %v339 = vsub.s32 0, %v338
    %v340 = vadd.s32 %v335, 1
    %vm341 = vcmp.gt.s32.totalorder %v340, 0
    %v342 = vsel %vm341, %v340, 0
    %v343 = vshrl.u32 %v342, 5
    %v344 = vand.u32 %v342, 31
    %v345 = vsub.s32 32, %v344
    %v346 = vshrl.u32 683565275, %v345
    %v347 = vshll.u32 683565275, %v344
    %v348 = vshrl.u32 2475754826, %v345
    %v349 = vor.u32 %v347, %v348
    %v350 = vshll.u32 2475754826, %v344
    %v351 = vshrl.u32 2131351028, %v345
    %v352 = vor.u32 %v350, %v351
    %v353 = vshll.u32 2131351028, %v344
    %v354 = vshrl.u32 2102212464, %v345
    %v355 = vor.u32 %v353, %v354
    %v356 = vshll.u32 2102212464, %v344
    %v357 = vshrl.u32 920167782, %v345
    %v358 = vor.u32 %v356, %v357
    %v359 = vshll.u32 920167782, %v344
    %v360 = vshrl.u32 1326507024, %v345
    %v361 = vor.u32 %v359, %v360
    %vm362 = vcmp.lt.s32.totalorder %v343, 1
    %vm363 = vcmp.lt.s32.totalorder %v343, 2
    %vm364 = vcmp.lt.s32.totalorder %v343, 3
    %vm365 = vcmp.lt.s32.totalorder %v343, 4
    %v366 = vsel %vm362, %v346, %v349
    %v367 = vsel %vm365, %v355, 2102212464
    %v368 = vsel %vm364, %v352, %v367
    %v369 = vsel %vm363, %v366, %v368
    %v370 = vsel %vm362, %v349, %v352
    %v371 = vsel %vm365, %v358, 920167782
    %v372 = vsel %vm364, %v355, %v371
    %v373 = vsel %vm363, %v370, %v372
    %v374 = vsel %vm362, %v352, %v355
    %v375 = vsel %vm365, %v361, 1326507024
    %v376 = vsel %vm364, %v358, %v375
    %v377 = vsel %vm363, %v374, %v376
    %v378 = vshll.u32 %v338, 8
    %v379 = vmul.u32.u64.compose %v378, %v377
    %v380 = vextract.low.u32 %v379
    %v381 = vextract.high.u32 %v379
    %v382 = vmul.u32.u64.compose %v378, %v373
    %v383 = vextract.low.u32 %v382
    %v384 = vextract.high.u32 %v382
    %v385 = vmul.u32 %v378, %v369
    %v386 = vadd.s32 %v381, %v383
    %vm387 = vc.u32 %v381, %v383
    %v388 = vadd.s32 %v384, 1
    %v389 = vsel %vm387, %v388, %v384
    %v390 = vadd.s32 %v385, %v389
    %v391 = vadd.s32 %v390, 536870912
    %v392 = vshrl.u32 %v391, 30
    %v393 = vshll.u32 %v392, 30
    %v394 = vsub.s32 %v390, %v393
    %vm395 = vcmp.lt.s32.totalorder %v394, 0
    %v396 = vsub.s32 0, %v394
    %v397 = vsel %vm395, %v396, %v394
    %v398 = vclz %v397
    %v399 = vsub.s32 %v398, 2
    %vm400 = vcmp.gt.s32.totalorder 0, %v399
    %v401 = vsel %vm400, 0, %v399
    %v402 = vsub.s32 32, %v401
    %v403 = vshll.u32 %v394, %v401
    %v404 = vshrl.u32 %v386, %v402
    %v405 = vor.u32 %v403, %v404
    %v406 = vsub.s32 4294967266, %v401
    %v407 = vadd.s32 %v406, 127
    %v408 = vshll.u32 %v407, 23
    %v409 = vor.u32 4788187, %v408
    %v410 = vand.u32 2147483647, %v409
    %v412 = vcvt.s32.f32 %v405
    %v413 = vmul.f32 %v412, %v410
    %v414 = vxor.u32 %v413, 2147483648
    %v415 = vsel %vm332, %v414, %v413
    %v416 = vsub.s32 4, %v392
    %v417 = vsel %vm332, %v416, %v392
    %v418 = vsel %vm331, %v211, %v415
    %v419 = vsel %vm331, 0, %v417
    %v420 = vcosq.f32.pop %v418
    %v421 = vsinq.f32.pop %v418
    %vm422 = vweird.f32 %v211
    %v423 = vadd.s32 %v419, 3
    %v424 = vand.u32 %v423, 3
    %vm425 = vcmp.lt.s32.totalorder %v424, 2
    %vm426 = vcmp.eq.s32.totalorder %v424, 0
    %v427 = vxor.u32 %v421, 2147483648
    %v428 = vsel %vm426, %v420, %v427
    %vm429 = vcmp.eq.s32.totalorder %v424, 2
    %v430 = vxor.u32 %v420, 2147483648
    %v431 = vsel %vm429, %v430, %v421
    %v432 = vsel %vm425, %v428, %v431
    %v433 = vsel %vm422, nan, %v432
    %v434 = vand.u32 2147483647, %v212
    %vm435 = vcmp.le.f32.partialorder %v434, 0.7853982
    %vm436 = vcmp.lt.s32.totalorder %v212, 0
    %v437 = vand.u32 %v212, 2139095040
    %v438 = vshrl.u32 %v437, 23
    %v439 = vsub.s32 %v438, 127
    %v440 = vand.u32 2147483647, %v212
    %v441 = vand.u32 %v440, 8388607
    %v442 = vor.u32 %v441, 8388608
    %v443 = vsub.s32 0, %v442
    %v444 = vadd.s32 %v439, 1
    %vm445 = vcmp.gt.s32.totalorder %v444, 0
    %v446 = vsel %vm445, %v444, 0
    %v447 = vshrl.u32 %v446, 5
    %v448 = vand.u32 %v446, 31
    %v449 = vsub.s32 32, %v448
    %v450 = vshrl.u32 683565275, %v449
    %v451 = vshll.u32 683565275, %v448
    %v452 = vshrl.u32 2475754826, %v449
    %v453 = vor.u32 %v451, %v452
    %v454 = vshll.u32 2475754826, %v448
    %v455 = vshrl.u32 2131351028, %v449
    %v456 = vor.u32 %v454, %v455
    %v457 = vshll.u32 2131351028, %v448
    %v458 = vshrl.u32 2102212464, %v449
    %v459 = vor.u32 %v457, %v458
    %v460 = vshll.u32 2102212464, %v448
    %v461 = vshrl.u32 920167782, %v449
    %v462 = vor.u32 %v460, %v461
    %v463 = vshll.u32 920167782, %v448
    %v464 = vshrl.u32 1326507024, %v449
    %v465 = vor.u32 %v463, %v464
    %vm466 = vcmp.lt.s32.totalorder %v447, 1
    %vm467 = vcmp.lt.s32.totalorder %v447, 2
    %vm468 = vcmp.lt.s32.totalorder %v447, 3
    %vm469 = vcmp.lt.s32.totalorder %v447, 4
    %v470 = vsel %vm466, %v450, %v453
    %v471 = vsel %vm469, %v459, 2102212464
    %v472 = vsel %vm468, %v456, %v471
    %v473 = vsel %vm467, %v470, %v472
    %v474 = vsel %vm466, %v453, %v456
    %v475 = vsel %vm469, %v462, 920167782
    %v476 = vsel %vm468, %v459, %v475
    %v477 = vsel %vm467, %v474, %v476
    %v478 = vsel %vm466, %v456, %v459
    %v479 = vsel %vm469, %v465, 1326507024
    %v480 = vsel %vm468, %v462, %v479
    %v481 = vsel %vm467, %v478, %v480
    %v482 = vshll.u32 %v442, 8
    %v483 = vmul.u32.u64.compose %v482, %v481
    %v484 = vextract.low.u32 %v483
    %v485 = vextract.high.u32 %v483
    %v486 = vmul.u32.u64.compose %v482, %v477
    %v487 = vextract.low.u32 %v486
    %v488 = vextract.high.u32 %v486
    %v489 = vmul.u32 %v482, %v473
    %v490 = vadd.s32 %v485, %v487
    %vm491 = vc.u32 %v485, %v487
    %v492 = vadd.s32 %v488, 1
    %v493 = vsel %vm491, %v492, %v488
    %v494 = vadd.s32 %v489, %v493
    %v495 = vadd.s32 %v494, 536870912
    %v496 = vshrl.u32 %v495, 30
    %v497 = vshll.u32 %v496, 30
    %v498 = vsub.s32 %v494, %v497
    %vm499 = vcmp.lt.s32.totalorder %v498, 0
    %v500 = vsub.s32 0, %v498
    %v501 = vsel %vm499, %v500, %v498
    %v502 = vclz %v501
    %v503 = vsub.s32 %v502, 2
    %vm504 = vcmp.gt.s32.totalorder 0, %v503
    %v505 = vsel %vm504, 0, %v503
    %v506 = vsub.s32 32, %v505
    %v507 = vshll.u32 %v498, %v505
    %v508 = vshrl.u32 %v490, %v506
    %v509 = vor.u32 %v507, %v508
    %v510 = vsub.s32 4294967266, %v505
    %v511 = vadd.s32 %v510, 127
    %v512 = vshll.u32 %v511, 23
    %v513 = vor.u32 4788187, %v512
    %v514 = vand.u32 2147483647, %v513
    %v516 = vcvt.s32.f32 %v509
    %v517 = vmul.f32 %v516, %v514
    %v518 = vxor.u32 %v517, 2147483648
    %v519 = vsel %vm436, %v518, %v517
    %v520 = vsub.s32 4, %v496
    %v521 = vsel %vm436, %v520, %v496
    %v522 = vsel %vm435, %v212, %v519
    %v523 = vsel %vm435, 0, %v521
    %v524 = vcosq.f32.pop %v522
    %v525 = vsinq.f32.pop %v522
    %vm526 = vweird.f32 %v212
    %v527 = vadd.s32 %v523, 3
    %v528 = vand.u32 %v527, 3
    %vm529 = vcmp.lt.s32.totalorder %v528, 2
    %vm530 = vcmp.eq.s32.totalorder %v528, 0
    %v531 = vxor.u32 %v525, 2147483648
    %v532 = vsel %vm530, %v524, %v531
    %vm533 = vcmp.eq.s32.totalorder %v528, 2
    %v534 = vxor.u32 %v524, 2147483648
    %v535 = vsel %vm533, %v534, %v525
    %v536 = vsel %vm529, %v532, %v535
    %v537 = vsel %vm526, nan, %v536
    %v538 = vand.u32 2147483647, %v213
    %vm539 = vcmp.le.f32.partialorder %v538, 0.7853982
    %vm540 = vcmp.lt.s32.totalorder %v213, 0
    %v541 = vand.u32 %v213, 2139095040
    %v542 = vshrl.u32 %v541, 23
    %v543 = vsub.s32 %v542, 127
    %v544 = vand.u32 2147483647, %v213
    %v545 = vand.u32 %v544, 8388607
    %v546 = vor.u32 %v545, 8388608
    %v547 = vsub.s32 0, %v546
    %v548 = vadd.s32 %v543, 1
    %vm549 = vcmp.gt.s32.totalorder %v548, 0
    %v550 = vsel %vm549, %v548, 0
    %v551 = vshrl.u32 %v550, 5
    %v552 = vand.u32 %v550, 31
    %v553 = vsub.s32 32, %v552
    %v554 = vshrl.u32 683565275, %v553
    %v555 = vshll.u32 683565275, %v552
    %v556 = vshrl.u32 2475754826, %v553
    %v557 = vor.u32 %v555, %v556
    %v558 = vshll.u32 2475754826, %v552
    %v559 = vshrl.u32 2131351028, %v553
    %v560 = vor.u32 %v558, %v559
    %v561 = vshll.u32 2131351028, %v552
    %v562 = vshrl.u32 2102212464, %v553
    %v563 = vor.u32 %v561, %v562
    %v564 = vshll.u32 2102212464, %v552
    %v565 = vshrl.u32 920167782, %v553
    %v566 = vor.u32 %v564, %v565
    %v567 = vshll.u32 920167782, %v552
    %v568 = vshrl.u32 1326507024, %v553
    %v569 = vor.u32 %v567, %v568
    %vm570 = vcmp.lt.s32.totalorder %v551, 1
    %vm571 = vcmp.lt.s32.totalorder %v551, 2
    %vm572 = vcmp.lt.s32.totalorder %v551, 3
    %vm573 = vcmp.lt.s32.totalorder %v551, 4
    %v574 = vsel %vm570, %v554, %v557
    %v575 = vsel %vm573, %v563, 2102212464
    %v576 = vsel %vm572, %v560, %v575
    %v577 = vsel %vm571, %v574, %v576
    %v578 = vsel %vm570, %v557, %v560
    %v579 = vsel %vm573, %v566, 920167782
    %v580 = vsel %vm572, %v563, %v579
    %v581 = vsel %vm571, %v578, %v580
    %v582 = vsel %vm570, %v560, %v563
    %v583 = vsel %vm573, %v569, 1326507024
    %v584 = vsel %vm572, %v566, %v583
    %v585 = vsel %vm571, %v582, %v584
    %v586 = vshll.u32 %v546, 8
    %v587 = vmul.u32.u64.compose %v586, %v585
    %v588 = vextract.low.u32 %v587
    %v589 = vextract.high.u32 %v587
    %v590 = vmul.u32.u64.compose %v586, %v581
    %v591 = vextract.low.u32 %v590
    %v592 = vextract.high.u32 %v590
    %v593 = vmul.u32 %v586, %v577
    %v594 = vadd.s32 %v589, %v591
    %vm595 = vc.u32 %v589, %v591
    %v596 = vadd.s32 %v592, 1
    %v597 = vsel %vm595, %v596, %v592
    %v598 = vadd.s32 %v593, %v597
    %v599 = vadd.s32 %v598, 536870912
    %v600 = vshrl.u32 %v599, 30
    %v601 = vshll.u32 %v600, 30
    %v602 = vsub.s32 %v598, %v601
    %vm603 = vcmp.lt.s32.totalorder %v602, 0
    %v604 = vsub.s32 0, %v602
    %v605 = vsel %vm603, %v604, %v602
    %v606 = vclz %v605
    %v607 = vsub.s32 %v606, 2
    %vm608 = vcmp.gt.s32.totalorder 0, %v607
    %v609 = vsel %vm608, 0, %v607
    %v610 = vsub.s32 32, %v609
    %v611 = vshll.u32 %v602, %v609
    %v612 = vshrl.u32 %v594, %v610
    %v613 = vor.u32 %v611, %v612
    %v614 = vsub.s32 4294967266, %v609
    %v615 = vadd.s32 %v614, 127
    %v616 = vshll.u32 %v615, 23
    %v617 = vor.u32 4788187, %v616
    %v618 = vand.u32 2147483647, %v617
    %v620 = vcvt.s32.f32 %v613
    %v621 = vmul.f32 %v620, %v618
    %v622 = vxor.u32 %v621, 2147483648
    %v623 = vsel %vm540, %v622, %v621
    %v624 = vsub.s32 4, %v600
    %v625 = vsel %vm540, %v624, %v600
    %v626 = vsel %vm539, %v213, %v623
    %v627 = vsel %vm539, 0, %v625
    %v628 = vcosq.f32.pop %v626
    %v629 = vsinq.f32.pop %v626
    %vm630 = vweird.f32 %v213
    %v631 = vadd.s32 %v627, 3
    %v632 = vand.u32 %v631, 3
    %vm633 = vcmp.lt.s32.totalorder %v632, 2
    %vm634 = vcmp.eq.s32.totalorder %v632, 0
    %v635 = vxor.u32 %v629, 2147483648
    %v636 = vsel %vm634, %v628, %v635
    %vm637 = vcmp.eq.s32.totalorder %v632, 2
    %v638 = vxor.u32 %v628, 2147483648
    %v639 = vsel %vm637, %v638, %v629
    %v640 = vsel %vm633, %v636, %v639
    %v641 = vsel %vm630, nan, %v640
    %v642 = vand.u32 2147483647, %v214
    %vm643 = vcmp.le.f32.partialorder %v642, 0.7853982
    %vm644 = vcmp.lt.s32.totalorder %v214, 0
    %v645 = vand.u32 %v214, 2139095040
    %v646 = vshrl.u32 %v645, 23
    %v647 = vsub.s32 %v646, 127
    %v648 = vand.u32 2147483647, %v214
    %v649 = vand.u32 %v648, 8388607
    %v650 = vor.u32 %v649, 8388608
    %v651 = vsub.s32 0, %v650
    %v652 = vadd.s32 %v647, 1
    %vm653 = vcmp.gt.s32.totalorder %v652, 0
    %v654 = vsel %vm653, %v652, 0
    %v655 = vshrl.u32 %v654, 5
    %v656 = vand.u32 %v654, 31
    %v657 = vsub.s32 32, %v656
    %v658 = vshrl.u32 683565275, %v657
    %v659 = vshll.u32 683565275, %v656
    %v660 = vshrl.u32 2475754826, %v657
    %v661 = vor.u32 %v659, %v660
    %v662 = vshll.u32 2475754826, %v656
    %v663 = vshrl.u32 2131351028, %v657
    %v664 = vor.u32 %v662, %v663
    %v665 = vshll.u32 2131351028, %v656
    %v666 = vshrl.u32 2102212464, %v657
    %v667 = vor.u32 %v665, %v666
    %v668 = vshll.u32 2102212464, %v656
    %v669 = vshrl.u32 920167782, %v657
    %v670 = vor.u32 %v668, %v669
    %v671 = vshll.u32 920167782, %v656
    %v672 = vshrl.u32 1326507024, %v657
    %v673 = vor.u32 %v671, %v672
    %vm674 = vcmp.lt.s32.totalorder %v655, 1
    %vm675 = vcmp.lt.s32.totalorder %v655, 2
    %vm676 = vcmp.lt.s32.totalorder %v655, 3
    %vm677 = vcmp.lt.s32.totalorder %v655, 4
    %v678 = vsel %vm674, %v658, %v661
    %v679 = vsel %vm677, %v667, 2102212464
    %v680 = vsel %vm676, %v664, %v679
    %v681 = vsel %vm675, %v678, %v680
    %v682 = vsel %vm674, %v661, %v664
    %v683 = vsel %vm677, %v670, 920167782
    %v684 = vsel %vm676, %v667, %v683
    %v685 = vsel %vm675, %v682, %v684
    %v686 = vsel %vm674, %v664, %v667
    %v687 = vsel %vm677, %v673, 1326507024
    %v688 = vsel %vm676, %v670, %v687
    %v689 = vsel %vm675, %v686, %v688
    %v690 = vshll.u32 %v650, 8
    %v691 = vmul.u32.u64.compose %v690, %v689
    %v692 = vextract.low.u32 %v691
    %v693 = vextract.high.u32 %v691
    %v694 = vmul.u32.u64.compose %v690, %v685
    %v695 = vextract.low.u32 %v694
    %v696 = vextract.high.u32 %v694
    %v697 = vmul.u32 %v690, %v681
    %v698 = vadd.s32 %v693, %v695
    %vm699 = vc.u32 %v693, %v695
    %v700 = vadd.s32 %v696, 1
    %v701 = vsel %vm699, %v700, %v696
    %v702 = vadd.s32 %v697, %v701
    %v703 = vadd.s32 %v702, 536870912
    %v704 = vshrl.u32 %v703, 30
    %v705 = vshll.u32 %v704, 30
    %v706 = vsub.s32 %v702, %v705
    %vm707 = vcmp.lt.s32.totalorder %v706, 0
    %v708 = vsub.s32 0, %v706
    %v709 = vsel %vm707, %v708, %v706
    %v710 = vclz %v709
    %v711 = vsub.s32 %v710, 2
    %vm712 = vcmp.gt.s32.totalorder 0, %v711
    %v713 = vsel %vm712, 0, %v711
    %v714 = vsub.s32 32, %v713
    %v715 = vshll.u32 %v706, %v713
    %v716 = vshrl.u32 %v698, %v714
    %v717 = vor.u32 %v715, %v716
    %v718 = vsub.s32 4294967266, %v713
    %v719 = vadd.s32 %v718, 127
    %v720 = vshll.u32 %v719, 23
    %v721 = vor.u32 4788187, %v720
    %v722 = vand.u32 2147483647, %v721
    %v724 = vcvt.s32.f32 %v717
    %v725 = vmul.f32 %v724, %v722
    %v726 = vxor.u32 %v725, 2147483648
    %v727 = vsel %vm644, %v726, %v725
    %v728 = vsub.s32 4, %v704
    %v729 = vsel %vm644, %v728, %v704
    %v730 = vsel %vm643, %v214, %v727
    %v731 = vsel %vm643, 0, %v729
    %v732 = vcosq.f32.pop %v730
    %v733 = vsinq.f32.pop %v730
    %vm734 = vweird.f32 %v214
    %v735 = vadd.s32 %v731, 3
    %v736 = vand.u32 %v735, 3
    %vm737 = vcmp.lt.s32.totalorder %v736, 2
    %vm738 = vcmp.eq.s32.totalorder %v736, 0
    %v739 = vxor.u32 %v733, 2147483648
    %v740 = vsel %vm738, %v732, %v739
    %vm741 = vcmp.eq.s32.totalorder %v736, 2
    %v742 = vxor.u32 %v732, 2147483648
    %v743 = vsel %vm741, %v742, %v733
    %v744 = vsel %vm737, %v740, %v743
    %v745 = vsel %vm734, nan, %v744
    %v746 = vand.u32 2147483647, %v215
    %vm747 = vcmp.le.f32.partialorder %v746, 0.7853982
    %vm748 = vcmp.lt.s32.totalorder %v215, 0
    %v749 = vand.u32 %v215, 2139095040
    %v750 = vshrl.u32 %v749, 23
    %v751 = vsub.s32 %v750, 127
    %v752 = vand.u32 2147483647, %v215
    %v753 = vand.u32 %v752, 8388607
    %v754 = vor.u32 %v753, 8388608
    %v755 = vsub.s32 0, %v754
    %v756 = vadd.s32 %v751, 1
    %vm757 = vcmp.gt.s32.totalorder %v756, 0
    %v758 = vsel %vm757, %v756, 0
    %v759 = vshrl.u32 %v758, 5
    %v760 = vand.u32 %v758, 31
    %v761 = vsub.s32 32, %v760
    %v762 = vshrl.u32 683565275, %v761
    %v763 = vshll.u32 683565275, %v760
    %v764 = vshrl.u32 2475754826, %v761
    %v765 = vor.u32 %v763, %v764
    %v766 = vshll.u32 2475754826, %v760
    %v767 = vshrl.u32 2131351028, %v761
    %v768 = vor.u32 %v766, %v767
    %v769 = vshll.u32 2131351028, %v760
    %v770 = vshrl.u32 2102212464, %v761
    %v771 = vor.u32 %v769, %v770
    %v772 = vshll.u32 2102212464, %v760
    %v773 = vshrl.u32 920167782, %v761
    %v774 = vor.u32 %v772, %v773
    %v775 = vshll.u32 920167782, %v760
    %v776 = vshrl.u32 1326507024, %v761
    %v777 = vor.u32 %v775, %v776
    %vm778 = vcmp.lt.s32.totalorder %v759, 1
    %vm779 = vcmp.lt.s32.totalorder %v759, 2
    %vm780 = vcmp.lt.s32.totalorder %v759, 3
    %vm781 = vcmp.lt.s32.totalorder %v759, 4
    %v782 = vsel %vm778, %v762, %v765
    %v783 = vsel %vm781, %v771, 2102212464
    %v784 = vsel %vm780, %v768, %v783
    %v785 = vsel %vm779, %v782, %v784
    %v786 = vsel %vm778, %v765, %v768
    %v787 = vsel %vm781, %v774, 920167782
    %v788 = vsel %vm780, %v771, %v787
    %v789 = vsel %vm779, %v786, %v788
    %v790 = vsel %vm778, %v768, %v771
    %v791 = vsel %vm781, %v777, 1326507024
    %v792 = vsel %vm780, %v774, %v791
    %v793 = vsel %vm779, %v790, %v792
    %v794 = vshll.u32 %v754, 8
    %v795 = vmul.u32.u64.compose %v794, %v793
    %v796 = vextract.low.u32 %v795
    %v797 = vextract.high.u32 %v795
    %v798 = vmul.u32.u64.compose %v794, %v789
    %v799 = vextract.low.u32 %v798
    %v800 = vextract.high.u32 %v798
    %v801 = vmul.u32 %v794, %v785
    %v802 = vadd.s32 %v797, %v799
    %vm803 = vc.u32 %v797, %v799
    %v804 = vadd.s32 %v800, 1
    %v805 = vsel %vm803, %v804, %v800
    %v806 = vadd.s32 %v801, %v805
    %v807 = vadd.s32 %v806, 536870912
    %v808 = vshrl.u32 %v807, 30
    %v809 = vshll.u32 %v808, 30
    %v810 = vsub.s32 %v806, %v809
    %vm811 = vcmp.lt.s32.totalorder %v810, 0
    %v812 = vsub.s32 0, %v810
    %v813 = vsel %vm811, %v812, %v810
    %v814 = vclz %v813
    %v815 = vsub.s32 %v814, 2
    %vm816 = vcmp.gt.s32.totalorder 0, %v815
    %v817 = vsel %vm816, 0, %v815
    %v818 = vsub.s32 32, %v817
    %v819 = vshll.u32 %v810, %v817
    %v820 = vshrl.u32 %v802, %v818
    %v821 = vor.u32 %v819, %v820
    %v822 = vsub.s32 4294967266, %v817
    %v823 = vadd.s32 %v822, 127
    %v824 = vshll.u32 %v823, 23
    %v825 = vor.u32 4788187, %v824
    %v826 = vand.u32 2147483647, %v825
    %v828 = vcvt.s32.f32 %v821
    %v829 = vmul.f32 %v828, %v826
    %v830 = vxor.u32 %v829, 2147483648
    %v831 = vsel %vm748, %v830, %v829
    %v832 = vsub.s32 4, %v808
    %v833 = vsel %vm748, %v832, %v808
    %v834 = vsel %vm747, %v215, %v831
    %v835 = vsel %vm747, 0, %v833
    %v836 = vcosq.f32.pop %v834
    %v837 = vsinq.f32.pop %v834
    %vm838 = vweird.f32 %v215
    %v839 = vadd.s32 %v835, 3
    %v840 = vand.u32 %v839, 3
    %vm841 = vcmp.lt.s32.totalorder %v840, 2
    %vm842 = vcmp.eq.s32.totalorder %v840, 0
    %v843 = vxor.u32 %v837, 2147483648
    %v844 = vsel %vm842, %v836, %v843
    %vm845 = vcmp.eq.s32.totalorder %v840, 2
    %v846 = vxor.u32 %v836, 2147483648
    %v847 = vsel %vm845, %v846, %v837
    %v848 = vsel %vm841, %v844, %v847
    %v849 = vsel %vm838, nan, %v848
    %v850 = vand.u32 2147483647, %v216
    %vm851 = vcmp.le.f32.partialorder %v850, 0.7853982
    %vm852 = vcmp.lt.s32.totalorder %v216, 0
    %v853 = vand.u32 %v216, 2139095040
    %v854 = vshrl.u32 %v853, 23
    %v855 = vsub.s32 %v854, 127
    %v856 = vand.u32 2147483647, %v216
    %v857 = vand.u32 %v856, 8388607
    %v858 = vor.u32 %v857, 8388608
    %v859 = vsub.s32 0, %v858
    %v860 = vadd.s32 %v855, 1
    %vm861 = vcmp.gt.s32.totalorder %v860, 0
    %v862 = vsel %vm861, %v860, 0
    %v863 = vshrl.u32 %v862, 5
    %v864 = vand.u32 %v862, 31
    %v865 = vsub.s32 32, %v864
    %v866 = vshrl.u32 683565275, %v865
    %v867 = vshll.u32 683565275, %v864
    %v868 = vshrl.u32 2475754826, %v865
    %v869 = vor.u32 %v867, %v868
    %v870 = vshll.u32 2475754826, %v864
    %v871 = vshrl.u32 2131351028, %v865
    %v872 = vor.u32 %v870, %v871
    %v873 = vshll.u32 2131351028, %v864
    %v874 = vshrl.u32 2102212464, %v865
    %v875 = vor.u32 %v873, %v874
    %v876 = vshll.u32 2102212464, %v864
    %v877 = vshrl.u32 920167782, %v865
    %v878 = vor.u32 %v876, %v877
    %v879 = vshll.u32 920167782, %v864
    %v880 = vshrl.u32 1326507024, %v865
    %v881 = vor.u32 %v879, %v880
    %vm882 = vcmp.lt.s32.totalorder %v863, 1
    %vm883 = vcmp.lt.s32.totalorder %v863, 2
    %vm884 = vcmp.lt.s32.totalorder %v863, 3
    %vm885 = vcmp.lt.s32.totalorder %v863, 4
    %v886 = vsel %vm882, %v866, %v869
    %v887 = vsel %vm885, %v875, 2102212464
    %v888 = vsel %vm884, %v872, %v887
    %v889 = vsel %vm883, %v886, %v888
    %v890 = vsel %vm882, %v869, %v872
    %v891 = vsel %vm885, %v878, 920167782
    %v892 = vsel %vm884, %v875, %v891
    %v893 = vsel %vm883, %v890, %v892
    %v894 = vsel %vm882, %v872, %v875
    %v895 = vsel %vm885, %v881, 1326507024
    %v896 = vsel %vm884, %v878, %v895
    %v897 = vsel %vm883, %v894, %v896
    %v898 = vshll.u32 %v858, 8
    %v899 = vmul.u32.u64.compose %v898, %v897
    %v900 = vextract.low.u32 %v899
    %v901 = vextract.high.u32 %v899
    %v902 = vmul.u32.u64.compose %v898, %v893
    %v903 = vextract.low.u32 %v902
    %v904 = vextract.high.u32 %v902
    %v905 = vmul.u32 %v898, %v889
    %v906 = vadd.s32 %v901, %v903
    %vm907 = vc.u32 %v901, %v903
    %v908 = vadd.s32 %v904, 1
    %v909 = vsel %vm907, %v908, %v904
    %v910 = vadd.s32 %v905, %v909
    %v911 = vadd.s32 %v910, 536870912
    %v912 = vshrl.u32 %v911, 30
    %v913 = vshll.u32 %v912, 30
    %v914 = vsub.s32 %v910, %v913
    %vm915 = vcmp.lt.s32.totalorder %v914, 0
    %v916 = vsub.s32 0, %v914
    %v917 = vsel %vm915, %v916, %v914
    %v918 = vclz %v917
    %v919 = vsub.s32 %v918, 2
    %vm920 = vcmp.gt.s32.totalorder 0, %v919
    %v921 = vsel %vm920, 0, %v919
    %v922 = vsub.s32 32, %v921
    %v923 = vshll.u32 %v914, %v921
    %v924 = vshrl.u32 %v906, %v922
    %v925 = vor.u32 %v923, %v924
    %v926 = vsub.s32 4294967266, %v921
    %v927 = vadd.s32 %v926, 127
    %v928 = vshll.u32 %v927, 23
    %v929 = vor.u32 4788187, %v928
    %v930 = vand.u32 2147483647, %v929
    %v932 = vcvt.s32.f32 %v925
    %v933 = vmul.f32 %v932, %v930
    %v934 = vxor.u32 %v933, 2147483648
    %v935 = vsel %vm852, %v934, %v933
    %v936 = vsub.s32 4, %v912
    %v937 = vsel %vm852, %v936, %v912
    %v938 = vsel %vm851, %v216, %v935
    %v939 = vsel %vm851, 0, %v937
    %v940 = vcosq.f32.pop %v938
    %v941 = vsinq.f32.pop %v938
    %vm942 = vweird.f32 %v216
    %v943 = vadd.s32 %v939, 3
    %v944 = vand.u32 %v943, 3
    %vm945 = vcmp.lt.s32.totalorder %v944, 2
    %vm946 = vcmp.eq.s32.totalorder %v944, 0
    %v947 = vxor.u32 %v941, 2147483648
    %v948 = vsel %vm946, %v940, %v947
    %vm949 = vcmp.eq.s32.totalorder %v944, 2
    %v950 = vxor.u32 %v940, 2147483648
    %v951 = vsel %vm949, %v950, %v941
    %v952 = vsel %vm945, %v948, %v951
    %v953 = vsel %vm942, nan, %v952
    %v954 = vand.u32 2147483647, %v217
    %vm955 = vcmp.le.f32.partialorder %v954, 0.7853982
    %vm956 = vcmp.lt.s32.totalorder %v217, 0
    %v957 = vand.u32 %v217, 2139095040
    %v958 = vshrl.u32 %v957, 23
    %v959 = vsub.s32 %v958, 127
    %v960 = vand.u32 2147483647, %v217
    %v961 = vand.u32 %v960, 8388607
    %v962 = vor.u32 %v961, 8388608
    %v963 = vsub.s32 0, %v962
    %v964 = vadd.s32 %v959, 1
    %vm965 = vcmp.gt.s32.totalorder %v964, 0
    %v966 = vsel %vm965, %v964, 0
    %v967 = vshrl.u32 %v966, 5
    %v968 = vand.u32 %v966, 31
    %v969 = vsub.s32 32, %v968
    %v970 = vshrl.u32 683565275, %v969
    %v971 = vshll.u32 683565275, %v968
    %v972 = vshrl.u32 2475754826, %v969
    %v973 = vor.u32 %v971, %v972
    %v974 = vshll.u32 2475754826, %v968
    %v975 = vshrl.u32 2131351028, %v969
    %v976 = vor.u32 %v974, %v975
    %v977 = vshll.u32 2131351028, %v968
    %v978 = vshrl.u32 2102212464, %v969
    %v979 = vor.u32 %v977, %v978
    %v980 = vshll.u32 2102212464, %v968
    %v981 = vshrl.u32 920167782, %v969
    %v982 = vor.u32 %v980, %v981
    %v983 = vshll.u32 920167782, %v968
    %v984 = vshrl.u32 1326507024, %v969
    %v985 = vor.u32 %v983, %v984
    %vm986 = vcmp.lt.s32.totalorder %v967, 1
    %vm987 = vcmp.lt.s32.totalorder %v967, 2
    %vm988 = vcmp.lt.s32.totalorder %v967, 3
    %vm989 = vcmp.lt.s32.totalorder %v967, 4
    %v990 = vsel %vm986, %v970, %v973
    %v991 = vsel %vm989, %v979, 2102212464
    %v992 = vsel %vm988, %v976, %v991
    %v993 = vsel %vm987, %v990, %v992
    %v994 = vsel %vm986, %v973, %v976
    %v995 = vsel %vm989, %v982, 920167782
    %v996 = vsel %vm988, %v979, %v995
    %v997 = vsel %vm987, %v994, %v996
    %v998 = vsel %vm986, %v976, %v979
    %v999 = vsel %vm989, %v985, 1326507024
    %v1000 = vsel %vm988, %v982, %v999
    %v1001 = vsel %vm987, %v998, %v1000
    %v1002 = vshll.u32 %v962, 8
    %v1003 = vmul.u32.u64.compose %v1002, %v1001
    %v1004 = vextract.low.u32 %v1003
    %v1005 = vextract.high.u32 %v1003
    %v1006 = vmul.u32.u64.compose %v1002, %v997
    %v1007 = vextract.low.u32 %v1006
    %v1008 = vextract.high.u32 %v1006
    %v1009 = vmul.u32 %v1002, %v993
    %v1010 = vadd.s32 %v1005, %v1007
    %vm1011 = vc.u32 %v1005, %v1007
    %v1012 = vadd.s32 %v1008, 1
    %v1013 = vsel %vm1011, %v1012, %v1008
    %v1014 = vadd.s32 %v1009, %v1013
    %v1015 = vadd.s32 %v1014, 536870912
    %v1016 = vshrl.u32 %v1015, 30
    %v1017 = vshll.u32 %v1016, 30
    %v1018 = vsub.s32 %v1014, %v1017
    %vm1019 = vcmp.lt.s32.totalorder %v1018, 0
    %v1020 = vsub.s32 0, %v1018
    %v1021 = vsel %vm1019, %v1020, %v1018
    %v1022 = vclz %v1021
    %v1023 = vsub.s32 %v1022, 2
    %vm1024 = vcmp.gt.s32.totalorder 0, %v1023
    %v1025 = vsel %vm1024, 0, %v1023
    %v1026 = vsub.s32 32, %v1025
    %v1027 = vshll.u32 %v1018, %v1025
    %v1028 = vshrl.u32 %v1010, %v1026
    %v1029 = vor.u32 %v1027, %v1028
    %v1030 = vsub.s32 4294967266, %v1025
    %v1031 = vadd.s32 %v1030, 127
    %v1032 = vshll.u32 %v1031, 23
    %v1033 = vor.u32 4788187, %v1032
    %v1034 = vand.u32 2147483647, %v1033
    %v1036 = vcvt.s32.f32 %v1029
    %v1037 = vmul.f32 %v1036, %v1034
    %v1038 = vxor.u32 %v1037, 2147483648
    %v1039 = vsel %vm956, %v1038, %v1037
    %v1040 = vsub.s32 4, %v1016
    %v1041 = vsel %vm956, %v1040, %v1016
    %v1042 = vsel %vm955, %v217, %v1039
    %v1043 = vsel %vm955, 0, %v1041
    %v1044 = vcosq.f32.pop %v1042
    %v1045 = vsinq.f32.pop %v1042
    %vm1046 = vweird.f32 %v217
    %v1047 = vadd.s32 %v1043, 3
    %v1048 = vand.u32 %v1047, 3
    %vm1049 = vcmp.lt.s32.totalorder %v1048, 2
    %vm1050 = vcmp.eq.s32.totalorder %v1048, 0
    %v1051 = vxor.u32 %v1045, 2147483648
    %v1052 = vsel %vm1050, %v1044, %v1051
    %vm1053 = vcmp.eq.s32.totalorder %v1048, 2
    %v1054 = vxor.u32 %v1044, 2147483648
    %v1055 = vsel %vm1053, %v1054, %v1045
    %v1056 = vsel %vm1049, %v1052, %v1055
    %v1057 = vsel %vm1046, nan, %v1056
    %v1058 = vand.u32 2147483647, %v218
    %vm1059 = vcmp.le.f32.partialorder %v1058, 0.7853982
    %vm1060 = vcmp.lt.s32.totalorder %v218, 0
    %v1061 = vand.u32 %v218, 2139095040
    %v1062 = vshrl.u32 %v1061, 23
    %v1063 = vsub.s32 %v1062, 127
    %v1064 = vand.u32 2147483647, %v218
    %v1065 = vand.u32 %v1064, 8388607
    %v1066 = vor.u32 %v1065, 8388608
    %v1067 = vsub.s32 0, %v1066
    %v1068 = vadd.s32 %v1063, 1
    %vm1069 = vcmp.gt.s32.totalorder %v1068, 0
    %v1070 = vsel %vm1069, %v1068, 0
    %v1071 = vshrl.u32 %v1070, 5
    %v1072 = vand.u32 %v1070, 31
    %v1073 = vsub.s32 32, %v1072
    %v1074 = vshrl.u32 683565275, %v1073
    %v1075 = vshll.u32 683565275, %v1072
    %v1076 = vshrl.u32 2475754826, %v1073
    %v1077 = vor.u32 %v1075, %v1076
    %v1078 = vshll.u32 2475754826, %v1072
    %v1079 = vshrl.u32 2131351028, %v1073
    %v1080 = vor.u32 %v1078, %v1079
    %v1081 = vshll.u32 2131351028, %v1072
    %v1082 = vshrl.u32 2102212464, %v1073
    %v1083 = vor.u32 %v1081, %v1082
    %v1084 = vshll.u32 2102212464, %v1072
    %v1085 = vshrl.u32 920167782, %v1073
    %v1086 = vor.u32 %v1084, %v1085
    %v1087 = vshll.u32 920167782, %v1072
    %v1088 = vshrl.u32 1326507024, %v1073
    %v1089 = vor.u32 %v1087, %v1088
    %vm1090 = vcmp.lt.s32.totalorder %v1071, 1
    %vm1091 = vcmp.lt.s32.totalorder %v1071, 2
    %vm1092 = vcmp.lt.s32.totalorder %v1071, 3
    %vm1093 = vcmp.lt.s32.totalorder %v1071, 4
    %v1094 = vsel %vm1090, %v1074, %v1077
    %v1095 = vsel %vm1093, %v1083, 2102212464
    %v1096 = vsel %vm1092, %v1080, %v1095
    %v1097 = vsel %vm1091, %v1094, %v1096
    %v1098 = vsel %vm1090, %v1077, %v1080
    %v1099 = vsel %vm1093, %v1086, 920167782
    %v1100 = vsel %vm1092, %v1083, %v1099
    %v1101 = vsel %vm1091, %v1098, %v1100
    %v1102 = vsel %vm1090, %v1080, %v1083
    %v1103 = vsel %vm1093, %v1089, 1326507024
    %v1104 = vsel %vm1092, %v1086, %v1103
    %v1105 = vsel %vm1091, %v1102, %v1104
    %v1106 = vshll.u32 %v1066, 8
    %v1107 = vmul.u32.u64.compose %v1106, %v1105
    %v1108 = vextract.low.u32 %v1107
    %v1109 = vextract.high.u32 %v1107
    %v1110 = vmul.u32.u64.compose %v1106, %v1101
    %v1111 = vextract.low.u32 %v1110
    %v1112 = vextract.high.u32 %v1110
    %v1113 = vmul.u32 %v1106, %v1097
    %v1114 = vadd.s32 %v1109, %v1111
    %vm1115 = vc.u32 %v1109, %v1111
    %v1116 = vadd.s32 %v1112, 1
    %v1117 = vsel %vm1115, %v1116, %v1112
    %v1118 = vadd.s32 %v1113, %v1117
    %v1119 = vadd.s32 %v1118, 536870912
    %v1120 = vshrl.u32 %v1119, 30
    %v1121 = vshll.u32 %v1120, 30
    %v1122 = vsub.s32 %v1118, %v1121
    %vm1123 = vcmp.lt.s32.totalorder %v1122, 0
    %v1124 = vsub.s32 0, %v1122
    %v1125 = vsel %vm1123, %v1124, %v1122
    %v1126 = vclz %v1125
    %v1127 = vsub.s32 %v1126, 2
    %vm1128 = vcmp.gt.s32.totalorder 0, %v1127
    %v1129 = vsel %vm1128, 0, %v1127
    %v1130 = vsub.s32 32, %v1129
    %v1131 = vshll.u32 %v1122, %v1129
    %v1132 = vshrl.u32 %v1114, %v1130
    %v1133 = vor.u32 %v1131, %v1132
    %v1134 = vsub.s32 4294967266, %v1129
    %v1135 = vadd.s32 %v1134, 127
    %v1136 = vshll.u32 %v1135, 23
    %v1137 = vor.u32 4788187, %v1136
    %v1138 = vand.u32 2147483647, %v1137
    %v1140 = vcvt.s32.f32 %v1133
    %v1141 = vmul.f32 %v1140, %v1138
    %v1142 = vxor.u32 %v1141, 2147483648
    %v1143 = vsel %vm1060, %v1142, %v1141
    %v1144 = vsub.s32 4, %v1120
    %v1145 = vsel %vm1060, %v1144, %v1120
    %v1146 = vsel %vm1059, %v218, %v1143
    %v1147 = vsel %vm1059, 0, %v1145
    %v1148 = vcosq.f32.pop %v1146
    %v1149 = vsinq.f32.pop %v1146
    %vm1150 = vweird.f32 %v218
    %v1151 = vadd.s32 %v1147, 3
    %v1152 = vand.u32 %v1151, 3
    %vm1153 = vcmp.lt.s32.totalorder %v1152, 2
    %vm1154 = vcmp.eq.s32.totalorder %v1152, 0
    %v1155 = vxor.u32 %v1149, 2147483648
    %v1156 = vsel %vm1154, %v1148, %v1155
    %vm1157 = vcmp.eq.s32.totalorder %v1152, 2
    %v1158 = vxor.u32 %v1148, 2147483648
    %v1159 = vsel %vm1157, %v1158, %v1149
    %v1160 = vsel %vm1153, %v1156, %v1159
    %v1161 = vsel %vm1150, nan, %v1160
    %v1162 = vand.u32 2147483647, %v219
    %vm1163 = vcmp.le.f32.partialorder %v1162, 0.7853982
    %vm1164 = vcmp.lt.s32.totalorder %v219, 0
    %v1165 = vand.u32 %v219, 2139095040
    %v1166 = vshrl.u32 %v1165, 23
    %v1167 = vsub.s32 %v1166, 127
    %v1168 = vand.u32 2147483647, %v219
    %v1169 = vand.u32 %v1168, 8388607
    %v1170 = vor.u32 %v1169, 8388608
    %v1171 = vsub.s32 0, %v1170
    %v1172 = vadd.s32 %v1167, 1
    %vm1173 = vcmp.gt.s32.totalorder %v1172, 0
    %v1174 = vsel %vm1173, %v1172, 0
    %v1175 = vshrl.u32 %v1174, 5
    %v1176 = vand.u32 %v1174, 31
    %v1177 = vsub.s32 32, %v1176
    %v1178 = vshrl.u32 683565275, %v1177
    %v1179 = vshll.u32 683565275, %v1176
    %v1180 = vshrl.u32 2475754826, %v1177
    %v1181 = vor.u32 %v1179, %v1180
    %v1182 = vshll.u32 2475754826, %v1176
    %v1183 = vshrl.u32 2131351028, %v1177
    %v1184 = vor.u32 %v1182, %v1183
    %v1185 = vshll.u32 2131351028, %v1176
    %v1186 = vshrl.u32 2102212464, %v1177
    %v1187 = vor.u32 %v1185, %v1186
    %v1188 = vshll.u32 2102212464, %v1176
    %v1189 = vshrl.u32 920167782, %v1177
    %v1190 = vor.u32 %v1188, %v1189
    %v1191 = vshll.u32 920167782, %v1176
    %v1192 = vshrl.u32 1326507024, %v1177
    %v1193 = vor.u32 %v1191, %v1192
    %vm1194 = vcmp.lt.s32.totalorder %v1175, 1
    %vm1195 = vcmp.lt.s32.totalorder %v1175, 2
    %vm1196 = vcmp.lt.s32.totalorder %v1175, 3
    %vm1197 = vcmp.lt.s32.totalorder %v1175, 4
    %v1198 = vsel %vm1194, %v1178, %v1181
    %v1199 = vsel %vm1197, %v1187, 2102212464
    %v1200 = vsel %vm1196, %v1184, %v1199
    %v1201 = vsel %vm1195, %v1198, %v1200
    %v1202 = vsel %vm1194, %v1181, %v1184
    %v1203 = vsel %vm1197, %v1190, 920167782
    %v1204 = vsel %vm1196, %v1187, %v1203
    %v1205 = vsel %vm1195, %v1202, %v1204
    %v1206 = vsel %vm1194, %v1184, %v1187
    %v1207 = vsel %vm1197, %v1193, 1326507024
    %v1208 = vsel %vm1196, %v1190, %v1207
    %v1209 = vsel %vm1195, %v1206, %v1208
    %v1210 = vshll.u32 %v1170, 8
    %v1211 = vmul.u32.u64.compose %v1210, %v1209
    %v1212 = vextract.low.u32 %v1211
    %v1213 = vextract.high.u32 %v1211
    %v1214 = vmul.u32.u64.compose %v1210, %v1205
    %v1215 = vextract.low.u32 %v1214
    %v1216 = vextract.high.u32 %v1214
    %v1217 = vmul.u32 %v1210, %v1201
    %v1218 = vadd.s32 %v1213, %v1215
    %vm1219 = vc.u32 %v1213, %v1215
    %v1220 = vadd.s32 %v1216, 1
    %v1221 = vsel %vm1219, %v1220, %v1216
    %v1222 = vadd.s32 %v1217, %v1221
    %v1223 = vadd.s32 %v1222, 536870912
    %v1224 = vshrl.u32 %v1223, 30
    %v1225 = vshll.u32 %v1224, 30
    %v1226 = vsub.s32 %v1222, %v1225
    %vm1227 = vcmp.lt.s32.totalorder %v1226, 0
    %v1228 = vsub.s32 0, %v1226
    %v1229 = vsel %vm1227, %v1228, %v1226
    %v1230 = vclz %v1229
    %v1231 = vsub.s32 %v1230, 2
    %vm1232 = vcmp.gt.s32.totalorder 0, %v1231
    %v1233 = vsel %vm1232, 0, %v1231
    %v1234 = vsub.s32 32, %v1233
    %v1235 = vshll.u32 %v1226, %v1233
    %v1236 = vshrl.u32 %v1218, %v1234
    %v1237 = vor.u32 %v1235, %v1236
    %v1238 = vsub.s32 4294967266, %v1233
    %v1239 = vadd.s32 %v1238, 127
    %v1240 = vshll.u32 %v1239, 23
    %v1241 = vor.u32 4788187, %v1240
    %v1242 = vand.u32 2147483647, %v1241
    %v1244 = vcvt.s32.f32 %v1237
    %v1245 = vmul.f32 %v1244, %v1242
    %v1246 = vxor.u32 %v1245, 2147483648
    %v1247 = vsel %vm1164, %v1246, %v1245
    %v1248 = vsub.s32 4, %v1224
    %v1249 = vsel %vm1164, %v1248, %v1224
    %v1250 = vsel %vm1163, %v219, %v1247
    %v1251 = vsel %vm1163, 0, %v1249
    %v1252 = vcosq.f32.pop %v1250
    %v1253 = vsinq.f32.pop %v1250
    %vm1254 = vweird.f32 %v219
    %v1255 = vadd.s32 %v1251, 3
    %v1256 = vand.u32 %v1255, 3
    %vm1257 = vcmp.lt.s32.totalorder %v1256, 2
    %vm1258 = vcmp.eq.s32.totalorder %v1256, 0
    %v1259 = vxor.u32 %v1253, 2147483648
    %v1260 = vsel %vm1258, %v1252, %v1259
    %vm1261 = vcmp.eq.s32.totalorder %v1256, 2
    %v1262 = vxor.u32 %v1252, 2147483648
    %v1263 = vsel %vm1261, %v1262, %v1253
    %v1264 = vsel %vm1257, %v1260, %v1263
    %v1265 = vsel %vm1254, nan, %v1264
    %v1266 = vand.u32 2147483647, %v220
    %vm1267 = vcmp.le.f32.partialorder %v1266, 0.7853982
    %vm1268 = vcmp.lt.s32.totalorder %v220, 0
    %v1269 = vand.u32 %v220, 2139095040
    %v1270 = vshrl.u32 %v1269, 23
    %v1271 = vsub.s32 %v1270, 127
    %v1272 = vand.u32 2147483647, %v220
    %v1273 = vand.u32 %v1272, 8388607
    %v1274 = vor.u32 %v1273, 8388608
    %v1275 = vsub.s32 0, %v1274
    %v1276 = vadd.s32 %v1271, 1
    %vm1277 = vcmp.gt.s32.totalorder %v1276, 0
    %v1278 = vsel %vm1277, %v1276, 0
    %v1279 = vshrl.u32 %v1278, 5
    %v1280 = vand.u32 %v1278, 31
    %v1281 = vsub.s32 32, %v1280
    %v1282 = vshrl.u32 683565275, %v1281
    %v1283 = vshll.u32 683565275, %v1280
    %v1284 = vshrl.u32 2475754826, %v1281
    %v1285 = vor.u32 %v1283, %v1284
    %v1286 = vshll.u32 2475754826, %v1280
    %v1287 = vshrl.u32 2131351028, %v1281
    %v1288 = vor.u32 %v1286, %v1287
    %v1289 = vshll.u32 2131351028, %v1280
    %v1290 = vshrl.u32 2102212464, %v1281
    %v1291 = vor.u32 %v1289, %v1290
    %v1292 = vshll.u32 2102212464, %v1280
    %v1293 = vshrl.u32 920167782, %v1281
    %v1294 = vor.u32 %v1292, %v1293
    %v1295 = vshll.u32 920167782, %v1280
    %v1296 = vshrl.u32 1326507024, %v1281
    %v1297 = vor.u32 %v1295, %v1296
    %vm1298 = vcmp.lt.s32.totalorder %v1279, 1
    %vm1299 = vcmp.lt.s32.totalorder %v1279, 2
    %vm1300 = vcmp.lt.s32.totalorder %v1279, 3
    %vm1301 = vcmp.lt.s32.totalorder %v1279, 4
    %v1302 = vsel %vm1298, %v1282, %v1285
    %v1303 = vsel %vm1301, %v1291, 2102212464
    %v1304 = vsel %vm1300, %v1288, %v1303
    %v1305 = vsel %vm1299, %v1302, %v1304
    %v1306 = vsel %vm1298, %v1285, %v1288
    %v1307 = vsel %vm1301, %v1294, 920167782
    %v1308 = vsel %vm1300, %v1291, %v1307
    %v1309 = vsel %vm1299, %v1306, %v1308
    %v1310 = vsel %vm1298, %v1288, %v1291
    %v1311 = vsel %vm1301, %v1297, 1326507024
    %v1312 = vsel %vm1300, %v1294, %v1311
    %v1313 = vsel %vm1299, %v1310, %v1312
    %v1314 = vshll.u32 %v1274, 8
    %v1315 = vmul.u32.u64.compose %v1314, %v1313
    %v1316 = vextract.low.u32 %v1315
    %v1317 = vextract.high.u32 %v1315
    %v1318 = vmul.u32.u64.compose %v1314, %v1309
    %v1319 = vextract.low.u32 %v1318
    %v1320 = vextract.high.u32 %v1318
    %v1321 = vmul.u32 %v1314, %v1305
    %v1322 = vadd.s32 %v1317, %v1319
    %vm1323 = vc.u32 %v1317, %v1319
    %v1324 = vadd.s32 %v1320, 1
    %v1325 = vsel %vm1323, %v1324, %v1320
    %v1326 = vadd.s32 %v1321, %v1325
    %v1327 = vadd.s32 %v1326, 536870912
    %v1328 = vshrl.u32 %v1327, 30
    %v1329 = vshll.u32 %v1328, 30
    %v1330 = vsub.s32 %v1326, %v1329
    %vm1331 = vcmp.lt.s32.totalorder %v1330, 0
    %v1332 = vsub.s32 0, %v1330
    %v1333 = vsel %vm1331, %v1332, %v1330
    %v1334 = vclz %v1333
    %v1335 = vsub.s32 %v1334, 2
    %vm1336 = vcmp.gt.s32.totalorder 0, %v1335
    %v1337 = vsel %vm1336, 0, %v1335
    %v1338 = vsub.s32 32, %v1337
    %v1339 = vshll.u32 %v1330, %v1337
    %v1340 = vshrl.u32 %v1322, %v1338
    %v1341 = vor.u32 %v1339, %v1340
    %v1342 = vsub.s32 4294967266, %v1337
    %v1343 = vadd.s32 %v1342, 127
    %v1344 = vshll.u32 %v1343, 23
    %v1345 = vor.u32 4788187, %v1344
    %v1346 = vand.u32 2147483647, %v1345
    %v1348 = vcvt.s32.f32 %v1341
    %v1349 = vmul.f32 %v1348, %v1346
    %v1350 = vxor.u32 %v1349, 2147483648
    %v1351 = vsel %vm1268, %v1350, %v1349
    %v1352 = vsub.s32 4, %v1328
    %v1353 = vsel %vm1268, %v1352, %v1328
    %v1354 = vsel %vm1267, %v220, %v1351
    %v1355 = vsel %vm1267, 0, %v1353
    %v1356 = vcosq.f32.pop %v1354
    %v1357 = vsinq.f32.pop %v1354
    %vm1358 = vweird.f32 %v220
    %v1359 = vadd.s32 %v1355, 3
    %v1360 = vand.u32 %v1359, 3
    %vm1361 = vcmp.lt.s32.totalorder %v1360, 2
    %vm1362 = vcmp.eq.s32.totalorder %v1360, 0
    %v1363 = vxor.u32 %v1357, 2147483648
    %v1364 = vsel %vm1362, %v1356, %v1363
    %vm1365 = vcmp.eq.s32.totalorder %v1360, 2
    %v1366 = vxor.u32 %v1356, 2147483648
    %v1367 = vsel %vm1365, %v1366, %v1357
    %v1368 = vsel %vm1361, %v1364, %v1367
    %v1369 = vsel %vm1358, nan, %v1368
    %v1370 = vand.u32 2147483647, %v221
    %vm1371 = vcmp.le.f32.partialorder %v1370, 0.7853982
    %vm1372 = vcmp.lt.s32.totalorder %v221, 0
    %v1373 = vand.u32 %v221, 2139095040
    %v1374 = vshrl.u32 %v1373, 23
    %v1375 = vsub.s32 %v1374, 127
    %v1376 = vand.u32 2147483647, %v221
    %v1377 = vand.u32 %v1376, 8388607
    %v1378 = vor.u32 %v1377, 8388608
    %v1379 = vsub.s32 0, %v1378
    %v1380 = vadd.s32 %v1375, 1
    %vm1381 = vcmp.gt.s32.totalorder %v1380, 0
    %v1382 = vsel %vm1381, %v1380, 0
    %v1383 = vshrl.u32 %v1382, 5
    %v1384 = vand.u32 %v1382, 31
    %v1385 = vsub.s32 32, %v1384
    %v1386 = vshrl.u32 683565275, %v1385
    %v1387 = vshll.u32 683565275, %v1384
    %v1388 = vshrl.u32 2475754826, %v1385
    %v1389 = vor.u32 %v1387, %v1388
    %v1390 = vshll.u32 2475754826, %v1384
    %v1391 = vshrl.u32 2131351028, %v1385
    %v1392 = vor.u32 %v1390, %v1391
    %v1393 = vshll.u32 2131351028, %v1384
    %v1394 = vshrl.u32 2102212464, %v1385
    %v1395 = vor.u32 %v1393, %v1394
    %v1396 = vshll.u32 2102212464, %v1384
    %v1397 = vshrl.u32 920167782, %v1385
    %v1398 = vor.u32 %v1396, %v1397
    %v1399 = vshll.u32 920167782, %v1384
    %v1400 = vshrl.u32 1326507024, %v1385
    %v1401 = vor.u32 %v1399, %v1400
    %vm1402 = vcmp.lt.s32.totalorder %v1383, 1
    %vm1403 = vcmp.lt.s32.totalorder %v1383, 2
    %vm1404 = vcmp.lt.s32.totalorder %v1383, 3
    %vm1405 = vcmp.lt.s32.totalorder %v1383, 4
    %v1406 = vsel %vm1402, %v1386, %v1389
    %v1407 = vsel %vm1405, %v1395, 2102212464
    %v1408 = vsel %vm1404, %v1392, %v1407
    %v1409 = vsel %vm1403, %v1406, %v1408
    %v1410 = vsel %vm1402, %v1389, %v1392
    %v1411 = vsel %vm1405, %v1398, 920167782
    %v1412 = vsel %vm1404, %v1395, %v1411
    %v1413 = vsel %vm1403, %v1410, %v1412
    %v1414 = vsel %vm1402, %v1392, %v1395
    %v1415 = vsel %vm1405, %v1401, 1326507024
    %v1416 = vsel %vm1404, %v1398, %v1415
    %v1417 = vsel %vm1403, %v1414, %v1416
    %v1418 = vshll.u32 %v1378, 8
    %v1419 = vmul.u32.u64.compose %v1418, %v1417
    %v1420 = vextract.low.u32 %v1419
    %v1421 = vextract.high.u32 %v1419
    %v1422 = vmul.u32.u64.compose %v1418, %v1413
    %v1423 = vextract.low.u32 %v1422
    %v1424 = vextract.high.u32 %v1422
    %v1425 = vmul.u32 %v1418, %v1409
    %v1426 = vadd.s32 %v1421, %v1423
    %vm1427 = vc.u32 %v1421, %v1423
    %v1428 = vadd.s32 %v1424, 1
    %v1429 = vsel %vm1427, %v1428, %v1424
    %v1430 = vadd.s32 %v1425, %v1429
    %v1431 = vadd.s32 %v1430, 536870912
    %v1432 = vshrl.u32 %v1431, 30
    %v1433 = vshll.u32 %v1432, 30
    %v1434 = vsub.s32 %v1430, %v1433
    %vm1435 = vcmp.lt.s32.totalorder %v1434, 0
    %v1436 = vsub.s32 0, %v1434
    %v1437 = vsel %vm1435, %v1436, %v1434
    %v1438 = vclz %v1437
    %v1439 = vsub.s32 %v1438, 2
    %vm1440 = vcmp.gt.s32.totalorder 0, %v1439
    %v1441 = vsel %vm1440, 0, %v1439
    %v1442 = vsub.s32 32, %v1441
    %v1443 = vshll.u32 %v1434, %v1441
    %v1444 = vshrl.u32 %v1426, %v1442
    %v1445 = vor.u32 %v1443, %v1444
    %v1446 = vsub.s32 4294967266, %v1441
    %v1447 = vadd.s32 %v1446, 127
    %v1448 = vshll.u32 %v1447, 23
    %v1449 = vor.u32 4788187, %v1448
    %v1450 = vand.u32 2147483647, %v1449
    %v1452 = vcvt.s32.f32 %v1445
    %v1453 = vmul.f32 %v1452, %v1450
    %v1454 = vxor.u32 %v1453, 2147483648
    %v1455 = vsel %vm1372, %v1454, %v1453
    %v1456 = vsub.s32 4, %v1432
    %v1457 = vsel %vm1372, %v1456, %v1432
    %v1458 = vsel %vm1371, %v221, %v1455
    %v1459 = vsel %vm1371, 0, %v1457
    %v1460 = vcosq.f32.pop %v1458
    %v1461 = vsinq.f32.pop %v1458
    %vm1462 = vweird.f32 %v221
    %v1463 = vadd.s32 %v1459, 3
    %v1464 = vand.u32 %v1463, 3
    %vm1465 = vcmp.lt.s32.totalorder %v1464, 2
    %vm1466 = vcmp.eq.s32.totalorder %v1464, 0
    %v1467 = vxor.u32 %v1461, 2147483648
    %v1468 = vsel %vm1466, %v1460, %v1467
    %vm1469 = vcmp.eq.s32.totalorder %v1464, 2
    %v1470 = vxor.u32 %v1460, 2147483648
    %v1471 = vsel %vm1469, %v1470, %v1461
    %v1472 = vsel %vm1465, %v1468, %v1471
    %v1473 = vsel %vm1462, nan, %v1472
    %v1474 = vand.u32 2147483647, %v222
    %vm1475 = vcmp.le.f32.partialorder %v1474, 0.7853982
    %vm1476 = vcmp.lt.s32.totalorder %v222, 0
    %v1477 = vand.u32 %v222, 2139095040
    %v1478 = vshrl.u32 %v1477, 23
    %v1479 = vsub.s32 %v1478, 127
    %v1480 = vand.u32 2147483647, %v222
    %v1481 = vand.u32 %v1480, 8388607
    %v1482 = vor.u32 %v1481, 8388608
    %v1483 = vsub.s32 0, %v1482
    %v1484 = vadd.s32 %v1479, 1
    %vm1485 = vcmp.gt.s32.totalorder %v1484, 0
    %v1486 = vsel %vm1485, %v1484, 0
    %v1487 = vshrl.u32 %v1486, 5
    %v1488 = vand.u32 %v1486, 31
    %v1489 = vsub.s32 32, %v1488
    %v1490 = vshrl.u32 683565275, %v1489
    %v1491 = vshll.u32 683565275, %v1488
    %v1492 = vshrl.u32 2475754826, %v1489
    %v1493 = vor.u32 %v1491, %v1492
    %v1494 = vshll.u32 2475754826, %v1488
    %v1495 = vshrl.u32 2131351028, %v1489
    %v1496 = vor.u32 %v1494, %v1495
    %v1497 = vshll.u32 2131351028, %v1488
    %v1498 = vshrl.u32 2102212464, %v1489
    %v1499 = vor.u32 %v1497, %v1498
    %v1500 = vshll.u32 2102212464, %v1488
    %v1501 = vshrl.u32 920167782, %v1489
    %v1502 = vor.u32 %v1500, %v1501
    %v1503 = vshll.u32 920167782, %v1488
    %v1504 = vshrl.u32 1326507024, %v1489
    %v1505 = vor.u32 %v1503, %v1504
    %vm1506 = vcmp.lt.s32.totalorder %v1487, 1
    %vm1507 = vcmp.lt.s32.totalorder %v1487, 2
    %vm1508 = vcmp.lt.s32.totalorder %v1487, 3
    %vm1509 = vcmp.lt.s32.totalorder %v1487, 4
    %v1510 = vsel %vm1506, %v1490, %v1493
    %v1511 = vsel %vm1509, %v1499, 2102212464
    %v1512 = vsel %vm1508, %v1496, %v1511
    %v1513 = vsel %vm1507, %v1510, %v1512
    %v1514 = vsel %vm1506, %v1493, %v1496
    %v1515 = vsel %vm1509, %v1502, 920167782
    %v1516 = vsel %vm1508, %v1499, %v1515
    %v1517 = vsel %vm1507, %v1514, %v1516
    %v1518 = vsel %vm1506, %v1496, %v1499
    %v1519 = vsel %vm1509, %v1505, 1326507024
    %v1520 = vsel %vm1508, %v1502, %v1519
    %v1521 = vsel %vm1507, %v1518, %v1520
    %v1522 = vshll.u32 %v1482, 8
    %v1523 = vmul.u32.u64.compose %v1522, %v1521
    %v1524 = vextract.low.u32 %v1523
    %v1525 = vextract.high.u32 %v1523
    %v1526 = vmul.u32.u64.compose %v1522, %v1517
    %v1527 = vextract.low.u32 %v1526
    %v1528 = vextract.high.u32 %v1526
    %v1529 = vmul.u32 %v1522, %v1513
    %v1530 = vadd.s32 %v1525, %v1527
    %vm1531 = vc.u32 %v1525, %v1527
    %v1532 = vadd.s32 %v1528, 1
    %v1533 = vsel %vm1531, %v1532, %v1528
    %v1534 = vadd.s32 %v1529, %v1533
    %v1535 = vadd.s32 %v1534, 536870912
    %v1536 = vshrl.u32 %v1535, 30
    %v1537 = vshll.u32 %v1536, 30
    %v1538 = vsub.s32 %v1534, %v1537
    %vm1539 = vcmp.lt.s32.totalorder %v1538, 0
    %v1540 = vsub.s32 0, %v1538
    %v1541 = vsel %vm1539, %v1540, %v1538
    %v1542 = vclz %v1541
    %v1543 = vsub.s32 %v1542, 2
    %vm1544 = vcmp.gt.s32.totalorder 0, %v1543
    %v1545 = vsel %vm1544, 0, %v1543
    %v1546 = vsub.s32 32, %v1545
    %v1547 = vshll.u32 %v1538, %v1545
    %v1548 = vshrl.u32 %v1530, %v1546
    %v1549 = vor.u32 %v1547, %v1548
    %v1550 = vsub.s32 4294967266, %v1545
    %v1551 = vadd.s32 %v1550, 127
    %v1552 = vshll.u32 %v1551, 23
    %v1553 = vor.u32 4788187, %v1552
    %v1554 = vand.u32 2147483647, %v1553
    %v1556 = vcvt.s32.f32 %v1549
    %v1557 = vmul.f32 %v1556, %v1554
    %v1558 = vxor.u32 %v1557, 2147483648
    %v1559 = vsel %vm1476, %v1558, %v1557
    %v1560 = vsub.s32 4, %v1536
    %v1561 = vsel %vm1476, %v1560, %v1536
    %v1562 = vsel %vm1475, %v222, %v1559
    %v1563 = vsel %vm1475, 0, %v1561
    %v1564 = vcosq.f32.pop %v1562
    %v1565 = vsinq.f32.pop %v1562
    %vm1566 = vweird.f32 %v222
    %v1567 = vadd.s32 %v1563, 3
    %v1568 = vand.u32 %v1567, 3
    %vm1569 = vcmp.lt.s32.totalorder %v1568, 2
    %vm1570 = vcmp.eq.s32.totalorder %v1568, 0
    %v1571 = vxor.u32 %v1565, 2147483648
    %v1572 = vsel %vm1570, %v1564, %v1571
    %vm1573 = vcmp.eq.s32.totalorder %v1568, 2
    %v1574 = vxor.u32 %v1564, 2147483648
    %v1575 = vsel %vm1573, %v1574, %v1565
    %v1576 = vsel %vm1569, %v1572, %v1575
    %v1577 = vsel %vm1566, nan, %v1576
    %v1578 = vand.u32 2147483647, %v223
    %vm1579 = vcmp.le.f32.partialorder %v1578, 0.7853982
    %vm1580 = vcmp.lt.s32.totalorder %v223, 0
    %v1581 = vand.u32 %v223, 2139095040
    %v1582 = vshrl.u32 %v1581, 23
    %v1583 = vsub.s32 %v1582, 127
    %v1584 = vand.u32 2147483647, %v223
    %v1585 = vand.u32 %v1584, 8388607
    %v1586 = vor.u32 %v1585, 8388608
    %v1587 = vsub.s32 0, %v1586
    %v1588 = vadd.s32 %v1583, 1
    %vm1589 = vcmp.gt.s32.totalorder %v1588, 0
    %v1590 = vsel %vm1589, %v1588, 0
    %v1591 = vshrl.u32 %v1590, 5
    %v1592 = vand.u32 %v1590, 31
    %v1593 = vsub.s32 32, %v1592
    %v1594 = vshrl.u32 683565275, %v1593
    %v1595 = vshll.u32 683565275, %v1592
    %v1596 = vshrl.u32 2475754826, %v1593
    %v1597 = vor.u32 %v1595, %v1596
    %v1598 = vshll.u32 2475754826, %v1592
    %v1599 = vshrl.u32 2131351028, %v1593
    %v1600 = vor.u32 %v1598, %v1599
    %v1601 = vshll.u32 2131351028, %v1592
    %v1602 = vshrl.u32 2102212464, %v1593
    %v1603 = vor.u32 %v1601, %v1602
    %v1604 = vshll.u32 2102212464, %v1592
    %v1605 = vshrl.u32 920167782, %v1593
    %v1606 = vor.u32 %v1604, %v1605
    %v1607 = vshll.u32 920167782, %v1592
    %v1608 = vshrl.u32 1326507024, %v1593
    %v1609 = vor.u32 %v1607, %v1608
    %vm1610 = vcmp.lt.s32.totalorder %v1591, 1
    %vm1611 = vcmp.lt.s32.totalorder %v1591, 2
    %vm1612 = vcmp.lt.s32.totalorder %v1591, 3
    %vm1613 = vcmp.lt.s32.totalorder %v1591, 4
    %v1614 = vsel %vm1610, %v1594, %v1597
    %v1615 = vsel %vm1613, %v1603, 2102212464
    %v1616 = vsel %vm1612, %v1600, %v1615
    %v1617 = vsel %vm1611, %v1614, %v1616
    %v1618 = vsel %vm1610, %v1597, %v1600
    %v1619 = vsel %vm1613, %v1606, 920167782
    %v1620 = vsel %vm1612, %v1603, %v1619
    %v1621 = vsel %vm1611, %v1618, %v1620
    %v1622 = vsel %vm1610, %v1600, %v1603
    %v1623 = vsel %vm1613, %v1609, 1326507024
    %v1624 = vsel %vm1612, %v1606, %v1623
    %v1625 = vsel %vm1611, %v1622, %v1624
    %v1626 = vshll.u32 %v1586, 8
    %v1627 = vmul.u32.u64.compose %v1626, %v1625
    %v1628 = vextract.low.u32 %v1627
    %v1629 = vextract.high.u32 %v1627
    %v1630 = vmul.u32.u64.compose %v1626, %v1621
    %v1631 = vextract.low.u32 %v1630
    %v1632 = vextract.high.u32 %v1630
    %v1633 = vmul.u32 %v1626, %v1617
    %v1634 = vadd.s32 %v1629, %v1631
    %vm1635 = vc.u32 %v1629, %v1631
    %v1636 = vadd.s32 %v1632, 1
    %v1637 = vsel %vm1635, %v1636, %v1632
    %v1638 = vadd.s32 %v1633, %v1637
    %v1639 = vadd.s32 %v1638, 536870912
    %v1640 = vshrl.u32 %v1639, 30
    %v1641 = vshll.u32 %v1640, 30
    %v1642 = vsub.s32 %v1638, %v1641
    %vm1643 = vcmp.lt.s32.totalorder %v1642, 0
    %v1644 = vsub.s32 0, %v1642
    %v1645 = vsel %vm1643, %v1644, %v1642
    %v1646 = vclz %v1645
    %v1647 = vsub.s32 %v1646, 2
    %vm1648 = vcmp.gt.s32.totalorder 0, %v1647
    %v1649 = vsel %vm1648, 0, %v1647
    %v1650 = vsub.s32 32, %v1649
    %v1651 = vshll.u32 %v1642, %v1649
    %v1652 = vshrl.u32 %v1634, %v1650
    %v1653 = vor.u32 %v1651, %v1652
    %v1654 = vsub.s32 4294967266, %v1649
    %v1655 = vadd.s32 %v1654, 127
    %v1656 = vshll.u32 %v1655, 23
    %v1657 = vor.u32 4788187, %v1656
    %v1658 = vand.u32 2147483647, %v1657
    %v1660 = vcvt.s32.f32 %v1653
    %v1661 = vmul.f32 %v1660, %v1658
    %v1662 = vxor.u32 %v1661, 2147483648
    %v1663 = vsel %vm1580, %v1662, %v1661
    %v1664 = vsub.s32 4, %v1640
    %v1665 = vsel %vm1580, %v1664, %v1640
    %v1666 = vsel %vm1579, %v223, %v1663
    %v1667 = vsel %vm1579, 0, %v1665
    %v1668 = vcosq.f32.pop %v1666
    %v1669 = vsinq.f32.pop %v1666
    %vm1670 = vweird.f32 %v223
    %v1671 = vadd.s32 %v1667, 3
    %v1672 = vand.u32 %v1671, 3
    %vm1673 = vcmp.lt.s32.totalorder %v1672, 2
    %vm1674 = vcmp.eq.s32.totalorder %v1672, 0
    %v1675 = vxor.u32 %v1669, 2147483648
    %v1676 = vsel %vm1674, %v1668, %v1675
    %vm1677 = vcmp.eq.s32.totalorder %v1672, 2
    %v1678 = vxor.u32 %v1668, 2147483648
    %v1679 = vsel %vm1677, %v1678, %v1669
    %v1680 = vsel %vm1673, %v1676, %v1679
    %v1681 = vsel %vm1670, nan, %v1680
    %v1682 = vand.u32 2147483647, %v224
    %vm1683 = vcmp.le.f32.partialorder %v1682, 0.7853982
    %vm1684 = vcmp.lt.s32.totalorder %v224, 0
    %v1685 = vand.u32 %v224, 2139095040
    %v1686 = vshrl.u32 %v1685, 23
    %v1687 = vsub.s32 %v1686, 127
    %v1688 = vand.u32 2147483647, %v224
    %v1689 = vand.u32 %v1688, 8388607
    %v1690 = vor.u32 %v1689, 8388608
    %v1691 = vsub.s32 0, %v1690
    %v1692 = vadd.s32 %v1687, 1
    %vm1693 = vcmp.gt.s32.totalorder %v1692, 0
    %v1694 = vsel %vm1693, %v1692, 0
    %v1695 = vshrl.u32 %v1694, 5
    %v1696 = vand.u32 %v1694, 31
    %v1697 = vsub.s32 32, %v1696
    %v1698 = vshrl.u32 683565275, %v1697
    %v1699 = vshll.u32 683565275, %v1696
    %v1700 = vshrl.u32 2475754826, %v1697
    %v1701 = vor.u32 %v1699, %v1700
    %v1702 = vshll.u32 2475754826, %v1696
    %v1703 = vshrl.u32 2131351028, %v1697
    %v1704 = vor.u32 %v1702, %v1703
    %v1705 = vshll.u32 2131351028, %v1696
    %v1706 = vshrl.u32 2102212464, %v1697
    %v1707 = vor.u32 %v1705, %v1706
    %v1708 = vshll.u32 2102212464, %v1696
    %v1709 = vshrl.u32 920167782, %v1697
    %v1710 = vor.u32 %v1708, %v1709
    %v1711 = vshll.u32 920167782, %v1696
    %v1712 = vshrl.u32 1326507024, %v1697
    %v1713 = vor.u32 %v1711, %v1712
    %vm1714 = vcmp.lt.s32.totalorder %v1695, 1
    %vm1715 = vcmp.lt.s32.totalorder %v1695, 2
    %vm1716 = vcmp.lt.s32.totalorder %v1695, 3
    %vm1717 = vcmp.lt.s32.totalorder %v1695, 4
    %v1718 = vsel %vm1714, %v1698, %v1701
    %v1719 = vsel %vm1717, %v1707, 2102212464
    %v1720 = vsel %vm1716, %v1704, %v1719
    %v1721 = vsel %vm1715, %v1718, %v1720
    %v1722 = vsel %vm1714, %v1701, %v1704
    %v1723 = vsel %vm1717, %v1710, 920167782
    %v1724 = vsel %vm1716, %v1707, %v1723
    %v1725 = vsel %vm1715, %v1722, %v1724
    %v1726 = vsel %vm1714, %v1704, %v1707
    %v1727 = vsel %vm1717, %v1713, 1326507024
    %v1728 = vsel %vm1716, %v1710, %v1727
    %v1729 = vsel %vm1715, %v1726, %v1728
    %v1730 = vshll.u32 %v1690, 8
    %v1731 = vmul.u32.u64.compose %v1730, %v1729
    %v1732 = vextract.low.u32 %v1731
    %v1733 = vextract.high.u32 %v1731
    %v1734 = vmul.u32.u64.compose %v1730, %v1725
    %v1735 = vextract.low.u32 %v1734
    %v1736 = vextract.high.u32 %v1734
    %v1737 = vmul.u32 %v1730, %v1721
    %v1738 = vadd.s32 %v1733, %v1735
    %vm1739 = vc.u32 %v1733, %v1735
    %v1740 = vadd.s32 %v1736, 1
    %v1741 = vsel %vm1739, %v1740, %v1736
    %v1742 = vadd.s32 %v1737, %v1741
    %v1743 = vadd.s32 %v1742, 536870912
    %v1744 = vshrl.u32 %v1743, 30
    %v1745 = vshll.u32 %v1744, 30
    %v1746 = vsub.s32 %v1742, %v1745
    %vm1747 = vcmp.lt.s32.totalorder %v1746, 0
    %v1748 = vsub.s32 0, %v1746
    %v1749 = vsel %vm1747, %v1748, %v1746
    %v1750 = vclz %v1749
    %v1751 = vsub.s32 %v1750, 2
    %vm1752 = vcmp.gt.s32.totalorder 0, %v1751
    %v1753 = vsel %vm1752, 0, %v1751
    %v1754 = vsub.s32 32, %v1753
    %v1755 = vshll.u32 %v1746, %v1753
    %v1756 = vshrl.u32 %v1738, %v1754
    %v1757 = vor.u32 %v1755, %v1756
    %v1758 = vsub.s32 4294967266, %v1753
    %v1759 = vadd.s32 %v1758, 127
    %v1760 = vshll.u32 %v1759, 23
    %v1761 = vor.u32 4788187, %v1760
    %v1762 = vand.u32 2147483647, %v1761
    %v1764 = vcvt.s32.f32 %v1757
    %v1765 = vmul.f32 %v1764, %v1762
    %v1766 = vxor.u32 %v1765, 2147483648
    %v1767 = vsel %vm1684, %v1766, %v1765
    %v1768 = vsub.s32 4, %v1744
    %v1769 = vsel %vm1684, %v1768, %v1744
    %v1770 = vsel %vm1683, %v224, %v1767
    %v1771 = vsel %vm1683, 0, %v1769
    %v1772 = vcosq.f32.pop %v1770
    %v1773 = vsinq.f32.pop %v1770
    %vm1774 = vweird.f32 %v224
    %v1775 = vadd.s32 %v1771, 3
    %v1776 = vand.u32 %v1775, 3
    %vm1777 = vcmp.lt.s32.totalorder %v1776, 2
    %vm1778 = vcmp.eq.s32.totalorder %v1776, 0
    %v1779 = vxor.u32 %v1773, 2147483648
    %v1780 = vsel %vm1778, %v1772, %v1779
    %vm1781 = vcmp.eq.s32.totalorder %v1776, 2
    %v1782 = vxor.u32 %v1772, 2147483648
    %v1783 = vsel %vm1781, %v1782, %v1773
    %v1784 = vsel %vm1777, %v1780, %v1783
    %v1785 = vsel %vm1774, nan, %v1784
    %v1786 = vand.u32 2147483647, %v225
    %vm1787 = vcmp.le.f32.partialorder %v1786, 0.7853982
    %vm1788 = vcmp.lt.s32.totalorder %v225, 0
    %v1789 = vand.u32 %v225, 2139095040
    %v1790 = vshrl.u32 %v1789, 23
    %v1791 = vsub.s32 %v1790, 127
    %v1792 = vand.u32 2147483647, %v225
    %v1793 = vand.u32 %v1792, 8388607
    %v1794 = vor.u32 %v1793, 8388608
    %v1795 = vsub.s32 0, %v1794
    %v1796 = vadd.s32 %v1791, 1
    %vm1797 = vcmp.gt.s32.totalorder %v1796, 0
    %v1798 = vsel %vm1797, %v1796, 0
    %v1799 = vshrl.u32 %v1798, 5
    %v1800 = vand.u32 %v1798, 31
    %v1801 = vsub.s32 32, %v1800
    %v1802 = vshrl.u32 683565275, %v1801
    %v1803 = vshll.u32 683565275, %v1800
    %v1804 = vshrl.u32 2475754826, %v1801
    %v1805 = vor.u32 %v1803, %v1804
    %v1806 = vshll.u32 2475754826, %v1800
    %v1807 = vshrl.u32 2131351028, %v1801
    %v1808 = vor.u32 %v1806, %v1807
    %v1809 = vshll.u32 2131351028, %v1800
    %v1810 = vshrl.u32 2102212464, %v1801
    %v1811 = vor.u32 %v1809, %v1810
    %v1812 = vshll.u32 2102212464, %v1800
    %v1813 = vshrl.u32 920167782, %v1801
    %v1814 = vor.u32 %v1812, %v1813
    %v1815 = vshll.u32 920167782, %v1800
    %v1816 = vshrl.u32 1326507024, %v1801
    %v1817 = vor.u32 %v1815, %v1816
    %vm1818 = vcmp.lt.s32.totalorder %v1799, 1
    %vm1819 = vcmp.lt.s32.totalorder %v1799, 2
    %vm1820 = vcmp.lt.s32.totalorder %v1799, 3
    %vm1821 = vcmp.lt.s32.totalorder %v1799, 4
    %v1822 = vsel %vm1818, %v1802, %v1805
    %v1823 = vsel %vm1821, %v1811, 2102212464
    %v1824 = vsel %vm1820, %v1808, %v1823
    %v1825 = vsel %vm1819, %v1822, %v1824
    %v1826 = vsel %vm1818, %v1805, %v1808
    %v1827 = vsel %vm1821, %v1814, 920167782
    %v1828 = vsel %vm1820, %v1811, %v1827
    %v1829 = vsel %vm1819, %v1826, %v1828
    %v1830 = vsel %vm1818, %v1808, %v1811
    %v1831 = vsel %vm1821, %v1817, 1326507024
    %v1832 = vsel %vm1820, %v1814, %v1831
    %v1833 = vsel %vm1819, %v1830, %v1832
    %v1834 = vshll.u32 %v1794, 8
    %v1835 = vmul.u32.u64.compose %v1834, %v1833
    %v1836 = vextract.low.u32 %v1835
    %v1837 = vextract.high.u32 %v1835
    %v1838 = vmul.u32.u64.compose %v1834, %v1829
    %v1839 = vextract.low.u32 %v1838
    %v1840 = vextract.high.u32 %v1838
    %v1841 = vmul.u32 %v1834, %v1825
    %v1842 = vadd.s32 %v1837, %v1839
    %vm1843 = vc.u32 %v1837, %v1839
    %v1844 = vadd.s32 %v1840, 1
    %v1845 = vsel %vm1843, %v1844, %v1840
    %v1846 = vadd.s32 %v1841, %v1845
    %v1847 = vadd.s32 %v1846, 536870912
    %v1848 = vshrl.u32 %v1847, 30
    %v1849 = vshll.u32 %v1848, 30
    %v1850 = vsub.s32 %v1846, %v1849
    %vm1851 = vcmp.lt.s32.totalorder %v1850, 0
    %v1852 = vsub.s32 0, %v1850
    %v1853 = vsel %vm1851, %v1852, %v1850
    %v1854 = vclz %v1853
    %v1855 = vsub.s32 %v1854, 2
    %vm1856 = vcmp.gt.s32.totalorder 0, %v1855
    %v1857 = vsel %vm1856, 0, %v1855
    %v1858 = vsub.s32 32, %v1857
    %v1859 = vshll.u32 %v1850, %v1857
    %v1860 = vshrl.u32 %v1842, %v1858
    %v1861 = vor.u32 %v1859, %v1860
    %v1862 = vsub.s32 4294967266, %v1857
    %v1863 = vadd.s32 %v1862, 127
    %v1864 = vshll.u32 %v1863, 23
    %v1865 = vor.u32 4788187, %v1864
    %v1866 = vand.u32 2147483647, %v1865
    %v1868 = vcvt.s32.f32 %v1861
    %v1869 = vmul.f32 %v1868, %v1866
    %v1870 = vxor.u32 %v1869, 2147483648
    %v1871 = vsel %vm1788, %v1870, %v1869
    %v1872 = vsub.s32 4, %v1848
    %v1873 = vsel %vm1788, %v1872, %v1848
    %v1874 = vsel %vm1787, %v225, %v1871
    %v1875 = vsel %vm1787, 0, %v1873
    %v1876 = vcosq.f32.pop %v1874
    %v1877 = vsinq.f32.pop %v1874
    %vm1878 = vweird.f32 %v225
    %v1879 = vadd.s32 %v1875, 3
    %v1880 = vand.u32 %v1879, 3
    %vm1881 = vcmp.lt.s32.totalorder %v1880, 2
    %vm1882 = vcmp.eq.s32.totalorder %v1880, 0
    %v1883 = vxor.u32 %v1877, 2147483648
    %v1884 = vsel %vm1882, %v1876, %v1883
    %vm1885 = vcmp.eq.s32.totalorder %v1880, 2
    %v1886 = vxor.u32 %v1876, 2147483648
    %v1887 = vsel %vm1885, %v1886, %v1877
    %v1888 = vsel %vm1881, %v1884, %v1887
    %v1889 = vsel %vm1878, nan, %v1888
    %v1890 = vpack.c.bf16 %v537, %v329
    %v1891 = vpack.c.bf16 %v641, %v433
    %v1892 = vpack.c.bf16 %v953, %v745
    %v1893 = vpack.c.bf16 %v1057, %v849
    %v1894 = vpack.c.bf16 %v1369, %v1161
    %v1895 = vpack.c.bf16 %v1473, %v1265
    %v1896 = vpack.c.bf16 %v1785, %v1577
    %v1897 = vpack.c.bf16 %v1889, %v1681
    %v1898 = vld [vmem:[%s0] sm:$0xf]
    %v1899 = vld [vmem:[%s0 + $0x4] sm:$0xf]
    %v1900 = vld [vmem:[%s0 + $0x8] sm:$0xf]
    %v1901 = vld [vmem:[%s0 + $0xc] sm:$0xf]
    %v1902 = vld [vmem:[%s0 + $0x10] sm:$0xf]
    %v1903 = vld [vmem:[%s0 + $0x14] sm:$0xf]
    %v1904 = vld [vmem:[%s0 + $0x18] sm:$0xf]
    %v1905 = vld [vmem:[%s0 + $0x1c] sm:$0xf]
    %v1906 = vld [vmem:[%s0 + $0x20] sm:$0xf]
    %v1907 = vld [vmem:[%s0 + $0x24] sm:$0xf]
    %v1908 = vld [vmem:[%s0 + $0x28] sm:$0xf]
    %v1909 = vld [vmem:[%s0 + $0x2c] sm:$0xf]
    %v1910 = vld [vmem:[%s0 + $0x30] sm:$0xf]
    %v1911 = vld [vmem:[%s0 + $0x34] sm:$0xf]
    %v1912 = vld [vmem:[%s0 + $0x38] sm:$0xf]
    %v1913 = vld [vmem:[%s0 + $0x3c] sm:$0xf]
    %v1914 = vld [vmem:[%s1] sm:$0xff]
    %v1915 = vld [vmem:[%s1 + $0x8] sm:$0xff]
    %v1916 = vld [vmem:[%s1 + $0x10] sm:$0xff]
    %v1917 = vld [vmem:[%s1 + $0x18] sm:$0xff]
    %v1918 = vld [vmem:[%s1 + $0x20] sm:$0xff]
    %v1919 = vld [vmem:[%s1 + $0x28] sm:$0xff]
    %v1920 = vld [vmem:[%s1 + $0x30] sm:$0xff]
    %v1921 = vld [vmem:[%s1 + $0x38] sm:$0xff]
    %v1922 = vld [vmem:[%s1 + $0x40] sm:$0xff]
    %v1923 = vld [vmem:[%s1 + $0x48] sm:$0xff]
    %v1924 = vld [vmem:[%s1 + $0x50] sm:$0xff]
    %v1925 = vld [vmem:[%s1 + $0x58] sm:$0xff]
    %v1926 = vld [vmem:[%s1 + $0x60] sm:$0xff]
    %v1927 = vld [vmem:[%s1 + $0x68] sm:$0xff]
    %v1928 = vld [vmem:[%s1 + $0x70] sm:$0xff]
    %v1929 = vld [vmem:[%s1 + $0x78] sm:$0xff]
    %1931 = vset.pattern.permute.xlu0 0
    %1932 = vperm.xlu0 %1931, %v1914
    %v1933 = vpop.permute.xlu0 %1932
    %1936 = vset.pattern.permute.xlu0 0
    %1937 = vperm.xlu0 %1936, %v1915
    %v1938 = vpop.permute.xlu0 %1937
    %1941 = vset.pattern.permute.xlu0 0
    %1942 = vperm.xlu0 %1941, %v1916
    %v1943 = vpop.permute.xlu0 %1942
    %1946 = vset.pattern.permute.xlu0 0
    %1947 = vperm.xlu0 %1946, %v1917
    %v1948 = vpop.permute.xlu0 %1947
    %1951 = vset.pattern.permute.xlu0 0
    %1952 = vperm.xlu0 %1951, %v1918
    %v1953 = vpop.permute.xlu0 %1952
    %1956 = vset.pattern.permute.xlu0 0
    %1957 = vperm.xlu0 %1956, %v1919
    %v1958 = vpop.permute.xlu0 %1957
    %1961 = vset.pattern.permute.xlu0 0
    %1962 = vperm.xlu0 %1961, %v1920
    %v1963 = vpop.permute.xlu0 %1962
    %1966 = vset.pattern.permute.xlu0 0
    %1967 = vperm.xlu0 %1966, %v1921
    %v1968 = vpop.permute.xlu0 %1967
    %1971 = vset.pattern.permute.xlu0 0
    %1972 = vperm.xlu0 %1971, %v1922
    %v1973 = vpop.permute.xlu0 %1972
    %1976 = vset.pattern.permute.xlu0 0
    %1977 = vperm.xlu0 %1976, %v1923
    %v1978 = vpop.permute.xlu0 %1977
    %1981 = vset.pattern.permute.xlu0 0
    %1982 = vperm.xlu0 %1981, %v1924
    %v1983 = vpop.permute.xlu0 %1982
    %1986 = vset.pattern.permute.xlu0 0
    %1987 = vperm.xlu0 %1986, %v1925
    %v1988 = vpop.permute.xlu0 %1987
    %1991 = vset.pattern.permute.xlu0 0
    %1992 = vperm.xlu0 %1991, %v1926
    %v1993 = vpop.permute.xlu0 %1992
    %1996 = vset.pattern.permute.xlu0 0
    %1997 = vperm.xlu0 %1996, %v1927
    %v1998 = vpop.permute.xlu0 %1997
    %2001 = vset.pattern.permute.xlu0 0
    %2002 = vperm.xlu0 %2001, %v1928
    %v2003 = vpop.permute.xlu0 %2002
    %2006 = vset.pattern.permute.xlu0 0
    %2007 = vperm.xlu0 %2006, %v1929
    %v2008 = vpop.permute.xlu0 %2007
    %v2026 = vunpack.c.l.b16 %v1898
    %v2027 = vunpack.c.l.b16 %v1899
    %v2028 = vunpack.c.l.b16 %v1900
    %v2029 = vunpack.c.l.b16 %v1901
    %v2030 = vunpack.c.l.b16 %v1902
    %v2031 = vunpack.c.l.b16 %v1903
    %v2032 = vunpack.c.l.b16 %v1904
    %v2033 = vunpack.c.l.b16 %v1905
    %v2034 = vunpack.c.l.b16 %v1906
    %v2035 = vunpack.c.l.b16 %v1907
    %v2036 = vunpack.c.l.b16 %v1908
    %v2037 = vunpack.c.l.b16 %v1909
    %v2038 = vunpack.c.l.b16 %v1910
    %v2039 = vunpack.c.l.b16 %v1911
    %v2040 = vunpack.c.l.b16 %v1912
    %v2041 = vunpack.c.l.b16 %v1913
    %v2042 = vpack.c.b16 %v2027, %v2026
    %v2043 = vpack.c.b16 %v2029, %v2028
    %v2044 = vpack.c.b16 %v2031, %v2030
    %v2045 = vpack.c.b16 %v2033, %v2032
    %v2046 = vpack.c.b16 %v2035, %v2034
    %v2047 = vpack.c.b16 %v2037, %v2036
    %v2048 = vpack.c.b16 %v2039, %v2038
    %v2049 = vpack.c.b16 %v2041, %v2040
    %vm2050 = vcmask 523264
    %v2052 = vsel %vm2050, %v2042, 0
    %v2055 = vsel %vm2050, %v2043, 0
    %v2058 = vsel %vm2050, %v2044, 0
    %v2061 = vsel %vm2050, %v2045, 0
    %v2064 = vsel %vm2050, %v2046, 0
    %v2067 = vsel %vm2050, %v2047, 0
    %v2070 = vsel %vm2050, %v2048, 0
    %v2073 = vsel %vm2050, %v2049, 0
    %2075 = vmatprep.subr.bf16.mxu0 0
    %2076 = vmatpush1.bf16.msra.mxu0 0
    %2077 = vmatprep.subr.bf16.mxu0 0
    %2078 = vmatpush1.bf16.msra.mxu0 0
    %2079 = vmatprep.subr.bf16.mxu0 0
    %2080 = vmatpush1.bf16.msra.mxu0 0
    %2081 = vmatprep.subr.bf16.mxu0 0
    %2082 = vmatpush1.bf16.msra.mxu0 0
    %2083 = vmatprep.subr.bf16.mxu0 %v1897
    %2084 = vmatpush1.bf16.msra.mxu0 %v1896
    %2085 = vmatprep.subr.bf16.mxu0 %v1895
    %2086 = vmatpush1.bf16.msra.mxu0 %v1894
    %2087 = vmatprep.subr.bf16.mxu0 %v1893
    %2088 = vmatpush1.bf16.msra.mxu0 %v1892
    %2089 = vmatprep.subr.bf16.mxu0 %v1891
    %2090 = vmatpush1.bf16.msra.mxu0 %v1890
    %2091 = vmatprep.subr.bf16.mxu0 0
    %2092 = vmatpush2.bf16.msra.mxu0 0
    %2093 = vmatprep.subr.bf16.mxu0 0
    %2094 = vmatpush2.bf16.msra.mxu0 0
    %2095 = vmatprep.subr.bf16.mxu0 0
    %2096 = vmatpush2.bf16.msra.mxu0 0
    %2097 = vmatprep.subr.bf16.mxu0 0
    %2098 = vmatpush2.bf16.msra.mxu0 0
    %2099 = vmatprep.subr.bf16.mxu0 0
    %2100 = vmatpush2.bf16.msra.mxu0 0
    %2101 = vmatprep.subr.bf16.mxu0 0
    %2102 = vmatpush2.bf16.msra.mxu0 0
    %2103 = vmatprep.subr.bf16.mxu0 0
    %2104 = vmatpush2.bf16.msra.mxu0 0
    %2105 = vmatprep.subr.bf16.mxu0 0
    %2106 = vmatpush2.bf16.msra.mxu0 0
    %2107 = vmatprep.mubr.bf16.mxu0 0
    %2108 = vmatmul.mubr.bf16.gmra.mxu0 %v2052
    %v2109 = vpop.f32.mrf.mxu0
    %v2110 = vadd.f32 %v1933, %v2109
    %v2111 = vpop.f32.mrf.mxu0
    %v2112 = vadd.f32 %v1933, %v2111
    %v2113 = vpop.f32.mrf.mxu0
    %v2114 = vadd.f32 %v1938, %v2113
    %v2115 = vpop.f32.mrf.mxu0
    %v2116 = vadd.f32 %v1938, %v2115
    %2117 = vmatprep.mubr.bf16.mxu0 0
    %2118 = vmatmul.mubr.bf16.gmra.mxu0 %v2055
    %v2119 = vpop.f32.mrf.mxu0
    %v2120 = vadd.f32 %v1943, %v2119
    %v2121 = vpop.f32.mrf.mxu0
    %v2122 = vadd.f32 %v1943, %v2121
    %v2123 = vpop.f32.mrf.mxu0
    %v2124 = vadd.f32 %v1948, %v2123
    %v2125 = vpop.f32.mrf.mxu0
    %v2126 = vadd.f32 %v1948, %v2125
    %2127 = vmatprep.mubr.bf16.mxu0 0
    %2128 = vmatmul.mubr.bf16.gmra.mxu0 %v2058
    %v2129 = vpop.f32.mrf.mxu0
    %v2130 = vadd.f32 %v1953, %v2129
    %v2131 = vpop.f32.mrf.mxu0
    %v2132 = vadd.f32 %v1953, %v2131
    %v2133 = vpop.f32.mrf.mxu0
    %v2134 = vadd.f32 %v1958, %v2133
    %v2135 = vpop.f32.mrf.mxu0
    %v2136 = vadd.f32 %v1958, %v2135
    %2137 = vmatprep.mubr.bf16.mxu0 0
    %2138 = vmatmul.mubr.bf16.gmra.mxu0 %v2061
    %v2139 = vpop.f32.mrf.mxu0
    %v2140 = vadd.f32 %v1963, %v2139
    %v2141 = vpop.f32.mrf.mxu0
    %v2142 = vadd.f32 %v1963, %v2141
    %v2143 = vpop.f32.mrf.mxu0
    %v2144 = vadd.f32 %v1968, %v2143
    %v2145 = vpop.f32.mrf.mxu0
    %v2146 = vadd.f32 %v1968, %v2145
    %2147 = vmatprep.mubr.bf16.mxu0 0
    %2148 = vmatmul.mubr.bf16.gmra.mxu0 %v2064
    %v2149 = vpop.f32.mrf.mxu0
    %v2150 = vadd.f32 %v1973, %v2149
    %v2151 = vpop.f32.mrf.mxu0
    %v2152 = vadd.f32 %v1973, %v2151
    %v2153 = vpop.f32.mrf.mxu0
    %v2154 = vadd.f32 %v1978, %v2153
    %v2155 = vpop.f32.mrf.mxu0
    %v2156 = vadd.f32 %v1978, %v2155
    %2157 = vmatprep.mubr.bf16.mxu0 0
    %2158 = vmatmul.mubr.bf16.gmra.mxu0 %v2067
    %v2159 = vpop.f32.mrf.mxu0
    %v2160 = vadd.f32 %v1983, %v2159
    %v2161 = vpop.f32.mrf.mxu0
    %v2162 = vadd.f32 %v1983, %v2161
    %v2163 = vpop.f32.mrf.mxu0
    %v2164 = vadd.f32 %v1988, %v2163
    %v2165 = vpop.f32.mrf.mxu0
    %v2166 = vadd.f32 %v1988, %v2165
    %2167 = vmatprep.mubr.bf16.mxu0 0
    %2168 = vmatmul.mubr.bf16.gmra.mxu0 %v2070
    %v2169 = vpop.f32.mrf.mxu0
    %v2170 = vadd.f32 %v1993, %v2169
    %v2171 = vpop.f32.mrf.mxu0
    %v2172 = vadd.f32 %v1993, %v2171
    %v2173 = vpop.f32.mrf.mxu0
    %v2174 = vadd.f32 %v1998, %v2173
    %v2175 = vpop.f32.mrf.mxu0
    %v2176 = vadd.f32 %v1998, %v2175
    %2177 = vmatprep.mubr.bf16.mxu0 0
    %2178 = vmatmul.mubr.bf16.gmra.mxu0 %v2073
    %v2179 = vpop.f32.mrf.mxu0
    %v2180 = vadd.f32 %v2003, %v2179
    %v2181 = vpop.f32.mrf.mxu0
    %v2182 = vadd.f32 %v2003, %v2181
    %v2183 = vpop.f32.mrf.mxu0
    %v2184 = vadd.f32 %v2008, %v2183
    %v2185 = vpop.f32.mrf.mxu0
    %v2186 = vadd.f32 %v2008, %v2185
    %2187 = vdwg.mxu0
    %2188 = vst [vmem:[#allocation2] sm:$0xff] %v2110
    %2189 = vst [vmem:[#allocation2 + $0x8] sm:$0xff] %v2112
    %2190 = vst [vmem:[#allocation2 + $0x10] sm:$0xff] %v2114
    %2191 = vst [vmem:[#allocation2 + $0x18] sm:$0xff] %v2116
    %2192 = vst [vmem:[#allocation2 + $0x20] sm:$0xff] %v2120
    %2193 = vst [vmem:[#allocation2 + $0x28] sm:$0xff] %v2122
    %2194 = vst [vmem:[#allocation2 + $0x30] sm:$0xff] %v2124
    %2195 = vst [vmem:[#allocation2 + $0x38] sm:$0xff] %v2126
    %2196 = vst [vmem:[#allocation2 + $0x40] sm:$0xff] %v2130
    %2197 = vst [vmem:[#allocation2 + $0x48] sm:$0xff] %v2132
    %2198 = vst [vmem:[#allocation2 + $0x50] sm:$0xff] %v2134
    %2199 = vst [vmem:[#allocation2 + $0x58] sm:$0xff] %v2136
    %2200 = vst [vmem:[#allocation2 + $0x60] sm:$0xff] %v2140
    %2201 = vst [vmem:[#allocation2 + $0x68] sm:$0xff] %v2142
    %2202 = vst [vmem:[#allocation2 + $0x70] sm:$0xff] %v2144
    %2203 = vst [vmem:[#allocation2 + $0x78] sm:$0xff] %v2146
    %2204 = vst [vmem:[#allocation2 + $0x80] sm:$0xff] %v2150
    %2205 = vst [vmem:[#allocation2 + $0x88] sm:$0xff] %v2152
    %2206 = vst [vmem:[#allocation2 + $0x90] sm:$0xff] %v2154
    %2207 = vst [vmem:[#allocation2 + $0x98] sm:$0xff] %v2156
    %2208 = vst [vmem:[#allocation2 + $0xa0] sm:$0xff] %v2160
    %2209 = vst [vmem:[#allocation2 + $0xa8] sm:$0xff] %v2162
    %2210 = vst [vmem:[#allocation2 + $0xb0] sm:$0xff] %v2164
    %2211 = vst [vmem:[#allocation2 + $0xb8] sm:$0xff] %v2166
    %2212 = vst [vmem:[#allocation2 + $0xc0] sm:$0xff] %v2170
    %2213 = vst [vmem:[#allocation2 + $0xc8] sm:$0xff] %v2172
    %2214 = vst [vmem:[#allocation2 + $0xd0] sm:$0xff] %v2174
    %2215 = vst [vmem:[#allocation2 + $0xd8] sm:$0xff] %v2176
    %2216 = vst [vmem:[#allocation2 + $0xe0] sm:$0xff] %v2180
    %2217 = vst [vmem:[#allocation2 + $0xe8] sm:$0xff] %v2182
    %2218 = vst [vmem:[#allocation2 + $0xf0] sm:$0xff] %v2184
    %2219 = vst [vmem:[#allocation2 + $0xf8] sm:$0xff] %v2186
    // Predicated region
    $region26: #{tpu_custom_call.1} parent=1 // pred_check
      _
    $region27: #{tpu_custom_call.1} parent=1 // pred_check_branch
      %2221 = sbr.rel (0) target = $region29
    $region28: #{tpu_custom_call.1} parent=1 // pred_region
      %s2223 = ssub.s32 4096, 4096
      %2224 = vsyncadd [#allocation3], %s2223
      %s2225 = sshll.u32 [#allocation2], 4
      %s2226 = int_to_ptr.vmem [resolvable:$true] %s2225
      %2231 = dma.vmem_to_hbm [thread:$0]  %s2226, 4096, %s6, [#allocation3], 256, 256, 16
    $region29: #{tpu_custom_call.1} parent=1 // pred_fallthru
      _
    // Predicated region
    $region30: #{tpu_custom_call.1} parent=1 // pred_check
      _
    $region31: #{tpu_custom_call.1} parent=1 // pred_check_branch
      %2233 = sbr.rel (0) target = $region33
    $region32: #{tpu_custom_call.1} parent=1 // pred_region
      %2234 = dma.done [#allocation3], 4096
    $region33: #{tpu_custom_call.1} parent=1 // pred_fallthru
      _
    %2235 = vsyncpa [#allocation3], 1

</llo_original>
